<compile_context>
chip_gen: v5e
topology: v5e:2x2
jax: 0.10.0
libtpu: 0.0.40
codegen_flags: <defaults>
</compile_context>

<pallas_src>
import functools
import math

import jax
import jax.numpy as jnp
import numpy as np
from jax import lax
from jax.experimental import pallas as pl
from jax.experimental.pallas import tpu as pltpu

_NEG_BIG = -0.7 * float(np.finfo(np.float32).max)   # finite "-inf" for masking


def _round_up(x, m):
    return ((x + m - 1) // m) * m


def _tpu_vmem_capacity_bytes():
    """Best-effort physical-VMEM query; conservative (v7x-sized) fallback."""
    try:
        info = pltpu.get_tpu_info()
        cap = getattr(info, "vmem_capacity_bytes", None)
        if cap:
            return int(cap)
    except Exception:
        pass
    return 64 * 1024 * 1024


def _adm_kernel_factory(has_cond, scale, mask_kv, sk_valid, tkv):
    """Builds the flash-style kernel body (static config baked in via closure).

    Per-step ref shapes (batch dim squeezed by BlockSpec):
      qt_ref:  [H, dh, tq]    Q^T tile (lane axis = q positions)
      k_ref:   [H, tkv, dh]   K chunk (natural layout)
      vt_ref:  [H, dh, tkv]   V^T chunk
      ck_ref:  [H, Sc, dh]    projected conditioning keys   (only if has_cond)
      cvt_ref: [H, dh, Sc]    projected conditioning values^T (only if has_cond)
      o_ref:   [H, dh, tq]    output^T tile
      m_sc/l_sc: VMEM [H, 1, tq] f32 online-softmax running max / sum
      acc_sc:    VMEM [H, dh, tq] f32 unnormalized output accumulator
    """

    def kernel(*refs):
        if has_cond:
            (qt_ref, k_ref, vt_ref, ck_ref, cvt_ref,
             o_ref, m_sc, l_sc, acc_sc) = refs
        else:
            qt_ref, k_ref, vt_ref, o_ref, m_sc, l_sc, acc_sc = refs

        ki = pl.program_id(2)
        # Scale the small Q operand once per step instead of the [H,tkv,tq]
        # score tile ("scale Q, not S" — 8-32x fewer VPU multiplies).
        qt = qt_ref[...] * scale                                        # [H,dh,tq]

        @pl.when(ki == 0)
        def _init():
            if has_cond:
                # Conditioning tokens act as the first KV chunk: they seed the
                # online-softmax state. cond_k / cond_v^T were projected in the
                # wrapper (hoisted out of the grid per the perf review).
                s_c = jnp.einsum('hkd,hdq->hkq', ck_ref[...], qt,
                                 preferred_element_type=jnp.float32)    # [H,Sc,tq]
                m0 = jnp.max(s_c, axis=1, keepdims=True)                # [H,1,tq]
                p_c = jnp.exp(s_c - m0)
                m_sc[...] = m0
                l_sc[...] = jnp.sum(p_c, axis=1, keepdims=True)
                acc_sc[...] = jnp.einsum('hdk,hkq->hdq', cvt_ref[...],
                                         p_c.astype(cvt_ref.dtype),
                                         preferred_element_type=jnp.float32)
            else:
                m_sc[...] = jnp.full_like(m_sc, _NEG_BIG)
                l_sc[...] = jnp.zeros_like(l_sc)
                acc_sc[...] = jnp.zeros_like(acc_sc)

        # Regular KV chunk `ki`, transposed formulation: scores [H,tkv,tq] are
        # lane-dense along the q tile (tq is a multiple of 128).
        s = jnp.einsum('hkd,hdq->hkq', k_ref[...], qt,
                       preferred_element_type=jnp.float32)              # [H,tkv,tq]
        if mask_kv:   # static: only emitted when Sk needed padding
            kv_idx = lax.broadcasted_iota(jnp.int32, s.shape, 1) + ki * tkv
            s = jnp.where(kv_idx < sk_valid, s, _NEG_BIG)

        m_prev = m_sc[...]
        m_new = jnp.maximum(m_prev, jnp.max(s, axis=1, keepdims=True))  # [H,1,tq]
        alpha = jnp.exp(m_prev - m_new)
        p = jnp.exp(s - m_new)                                          # [H,tkv,tq]
        l_sc[...] = alpha * l_sc[...] + jnp.sum(p, axis=1, keepdims=True)
        acc_sc[...] = alpha * acc_sc[...] + jnp.einsum(
            'hdk,hkq->hdq', vt_ref[...], p.astype(vt_ref.dtype),
            preferred_element_type=jnp.float32)                         # [H,dh,tq]
        m_sc[...] = m_new

        @pl.when(ki == pl.num_programs(2) - 1)
        def _finalize():
            # Exact reciprocal: runs once per (b, q-tile), so approx saves
            # nothing and exact keeps closer parity with the PyTorch softmax.
            inv_l = pl.reciprocal(l_sc[...], approx=False)
            o_ref[...] = (acc_sc[...] * inv_l).astype(o_ref.dtype)

    return kernel


def adm_cross_attention(q, k, v, conditional_embedding=None, w=None, bias=None, *,
                        compute_dtype=jnp.bfloat16,
                        q_tile_cap=None, kv_tile_cap=None,
                        vmem_limit_bytes=None, kv_buffer_depth=2):
    """JAX/Pallas port of ADMCrossAttention.forward.

    Args:
      q, k, v: [B, H, *spatial, dim_qkv // H]
      conditional_embedding: optional [B, *cond_dims, dim_cond]
      w:    [2*dim_qkv, dim_cond]   (PyTorch nn.Linear weight layout)
      bias: [2*dim_qkv]
      compute_dtype: matmul-operand dtype inside the kernel (default bf16;
        accumulation and softmax statistics stay f32). None = keep input dtype.
    Returns:
      [B, H, *spatial, dim_qkv // H] in the dtype of q.
    """
    B, H, *spatial, dh = q.shape
    Sq = math.prod(spatial)
    qf = q.reshape(B, H, Sq, dh)
    kf = k.reshape(B, H, -1, dh)
    vf = v.reshape(B, H, -1, dh)
    Sk = kf.shape[2]

    has_cond = conditional_embedding is not None
    if has_cond and (w is None or bias is None):
        raise ValueError("conditional_embedding given but cond_proj weights missing")

    # --- generation-aware tiling / VMEM budget -------------------------------
    vmem_cap = _tpu_vmem_capacity_bytes()
    big_vmem = vmem_cap >= 100 * 1024 * 1024          # v5e / v6e: 128 MiB; v7x: 64 MiB
    if q_tile_cap is None:
        q_tile_cap = 512 if big_vmem else 256
    if kv_tile_cap is None:
        kv_tile_cap = 1024 if big_vmem else 512
    if vmem_limit_bytes is None:
        # Budget must also cover the 2x f32 [H,tq,tkv] score/prob temporaries.
        vmem_limit_bytes = (96 if big_vmem else 48) * 1024 * 1024
    # v7x has 2 TensorCores: make sure B x (Sq//tq) exposes >= 2 work units.
    if B == 1 and Sq > 128:
        q_tile_cap = min(q_tile_cap,
                         max(128, (_round_up(Sq, 128) // 2) // 128 * 128))

    # tq / tkv are multiples of 128 so score / acc / output tiles are lane-dense;
    # Sq / Sk are padded (padded keys get masked in-kernel, padded q rows are
    # sliced off after the call).
    tq = min(q_tile_cap, _round_up(Sq, 128))
    Sq_pad = _round_up(Sq, tq)
    tkv = min(kv_tile_cap, _round_up(Sk, 128))
    Sk_pad = _round_up(Sk, tkv)

    if Sq_pad != Sq:
        qf = jnp.pad(qf, ((0, 0), (0, 0), (0, Sq_pad - Sq), (0, 0)))
    if Sk_pad != Sk:
        kf = jnp.pad(kf, ((0, 0), (0, 0), (0, Sk_pad - Sk), (0, 0)))
        vf = jnp.pad(vf, ((0, 0), (0, 0), (0, Sk_pad - Sk), (0, 0)))

    cd = compute_dtype if compute_dtype is not None else q.dtype
    # Layout plumbing (wrapper-side transposes -> lane-dense kernel tiles).
    qtf = jnp.swapaxes(qf, 2, 3).astype(cd)          # [B,H,dh,Sq_pad]
    kcf = kf.astype(cd)                              # [B,H,Sk_pad,dh]
    vtf = jnp.swapaxes(vf, 2, 3).astype(cd)          # [B,H,dh,Sk_pad]

    args = [qtf, kcf, vtf]
    Sc = 0
    if has_cond:
        # Conditioning projection hoisted out of the kernel (perf review #1):
        #   cond_proj(cond) -> split_multihead -> split into cond_k / cond_v.
        dc = conditional_embedding.shape[-1]
        condf = conditional_embedding.reshape(B, -1, dc)      # [B,Sc,dc]
        Sc = condf.shape[1]
        cp = jnp.einsum('bsc,oc->bso', condf, w) + bias       # [B,Sc,2*dim_qkv]
        cp = cp.reshape(B, Sc, H, 2 * dh)
        cp = jnp.moveaxis(cp, 2, 1)                           # [B,H,Sc,2*dh]
        ck = cp[..., :dh].astype(cd)                          # [B,H,Sc,dh]
        cvt = jnp.swapaxes(cp[..., dh:], 2, 3).astype(cd)     # [B,H,dh,Sc]
        args += [ck, cvt]

    grid = (B, Sq_pad // tq, Sk_pad // tkv)
    kernel = _adm_kernel_factory(has_cond=has_cond, scale=float(dh) ** -0.5,
                                 mask_kv=(Sk_pad != Sk), sk_valid=Sk, tkv=tkv)

    def _kv_spec(block_shape, index_map):
        # Optional deeper pipelining on the streaming KV inputs (sweepable).
        if kv_buffer_depth and kv_buffer_depth > 2:
            return pl.BlockSpec(block_shape, index_map,
                                pipeline_mode=pl.Buffered(kv_buffer_depth))
        return pl.BlockSpec(block_shape, index_map)

    in_specs = [
        pl.BlockSpec((None, H, dh, tq), lambda b, qi, ki: (b, 0, 0, qi)),   # Q^T
        _kv_spec((None, H, tkv, dh), lambda b, qi, ki: (b, 0, ki, 0)),      # K
        _kv_spec((None, H, dh, tkv), lambda b, qi, ki: (b, 0, 0, ki)),      # V^T
    ]
    if has_cond:
        in_specs += [
            pl.BlockSpec((None, H, Sc, dh), lambda b, qi, ki: (b, 0, 0, 0)),  # cond_k
            pl.BlockSpec((None, H, dh, Sc), lambda b, qi, ki: (b, 0, 0, 0)),  # cond_v^T
        ]

    out_t = pl.pallas_call(
        kernel,
        out_shape=jax.ShapeDtypeStruct((B, H, dh, Sq_pad), q.dtype),
        grid_spec=pltpu.PrefetchScalarGridSpec(
            num_scalar_prefetch=0,
            grid=grid,
            in_specs=in_specs,
            out_specs=pl.BlockSpec((None, H, dh, tq),
                                   lambda b, qi, ki: (b, 0, 0, qi)),
            scratch_shapes=[
                pltpu.VMEM((H, 1, tq), jnp.float32),    # running row max
                pltpu.VMEM((H, 1, tq), jnp.float32),    # running row sum
                pltpu.VMEM((H, dh, tq), jnp.float32),   # output accumulator
            ],
        ),
        compiler_params=pltpu.CompilerParams(
            # B / q-tile axes shard across v7x's 2 TensorCores; the KV axis
            # carries the online-softmax state and must stay "arbitrary".
            dimension_semantics=("parallel", "parallel", "arbitrary"),
            vmem_limit_bytes=vmem_limit_bytes,
        ),
    )(*args)

    out = jnp.swapaxes(out_t, 2, 3)[:, :, :Sq, :]     # drop padded q rows
    return out.reshape(q.shape)


def _reference(q, k, v, cond=None, w=None, bias=None):
    """Pure-JAX reproduction of the PyTorch forward, for verification."""
    B, H, *spatial, dh = q.shape
    qf = q.reshape(B, H, -1, dh)
    kf = k.reshape(B, H, -1, dh)
    vf = v.reshape(B, H, -1, dh)
    if cond is not None:
        cp = cond @ w.T + bias                               # [B,*cdims,2*dim_qkv]
        cp = cp.reshape(*cond.shape[:-1], H, 2 * dh)         # split_multihead
        cp = jnp.moveaxis(cp, -2, 1)                         # [B,H,*cdims,2*dh]
        cp = cp.reshape(B, H, -1, 2 * dh)
        ck, cv = cp[..., :dh], cp[..., dh:]
        kf = jnp.concatenate([ck, kf], axis=2)
        vf = jnp.concatenate([cv, vf], axis=2)
    s = jnp.einsum('bhqd,bhkd->bhqk', qf, kf) / jnp.sqrt(jnp.float32(dh))
    p = jax.nn.softmax(s, axis=-1)
    o = jnp.einsum('bhqk,bhkd->bhqd', p, vf)
    return o.reshape(q.shape)


if __name__ == "__main__":
    # Small shapes consistent with the module:
    #   dim_qkv = 32, n_head = 2 -> dh = 16; spatial = 4x4 -> Sq = Sk = 16
    #   dim_cond = 8, cond seq = 8
    B, H, dim_qkv, dim_cond = 2, 2, 32, 8
    dh = dim_qkv // H
    spatial = (4, 4)
    cond_seq = 8

    key = jax.random.PRNGKey(0)
    k1, k2, k3, k4, k5, k6 = jax.random.split(key, 6)
    q = jax.random.normal(k1, (B, H, *spatial, dh), jnp.float32)
    k = jax.random.normal(k2, (B, H, *spatial, dh), jnp.float32)
    v = jax.random.normal(k3, (B, H, *spatial, dh), jnp.float32)
    cond = jax.random.normal(k4, (B, cond_seq, dim_cond), jnp.float32)
    w = jax.random.normal(k5, (2 * dim_qkv, dim_cond), jnp.float32) * 0.1
    bias = jax.random.normal(k6, (2 * dim_qkv,), jnp.float32) * 0.1

    ref = _reference(q, k, v, cond, w, bias)

    # 1) f32 compute path: tight parity with the PyTorch-equivalent reference.
    out_f32 = jax.jit(functools.partial(
        adm_cross_attention, compute_dtype=jnp.float32))(q, k, v, cond, w, bias)
    jax.block_until_ready(out_f32)
    assert out_f32.shape == q.shape
    np.testing.assert_allclose(np.asarray(out_f32), np.asarray(ref),
                               atol=2e-3, rtol=2e-3)

    # 2) default bf16 compute (per perf review): f32 accumulation, looser tol.
    out_bf16 = jax.jit(adm_cross_attention)(q, k, v, cond, w, bias)
    jax.block_until_ready(out_bf16)
    np.testing.assert_allclose(np.asarray(out_bf16), np.asarray(ref),
                               atol=5e-2, rtol=5e-2)

    # 3) conditional_embedding=None (plain SDPA) branch of the module.
    out_nc = jax.jit(functools.partial(
        adm_cross_attention, compute_dtype=jnp.float32))(q, k, v)
    jax.block_until_ready(out_nc)
    ref_nc = _reference(q, k, v)
    np.testing.assert_allclose(np.asarray(out_nc), np.asarray(ref_nc),
                               atol=2e-3, rtol=2e-3)

    print("KERNEL_OK")
</pallas_src>

<mosaic_0001>
module attributes {stable_mosaic.version = 11 : i64} {
  func.func @kernel(%arg0: i32, %arg1: i32, %arg2: i32, %arg3: memref<1x2x16x128xf32, #tpu.memory_space<vmem>>, %arg4: memref<1x2x128x16xf32, #tpu.memory_space<vmem>>, %arg5: memref<1x2x16x128xf32, #tpu.memory_space<vmem>>, %arg6: memref<1x2x8x16xf32, #tpu.memory_space<vmem>>, %arg7: memref<1x2x16x8xf32, #tpu.memory_space<vmem>>, %arg8: memref<1x2x16x128xf32, #tpu.memory_space<vmem>>, %arg9: memref<2x1x128xf32, #tpu.memory_space<vmem>>, %arg10: memref<2x1x128xf32, #tpu.memory_space<vmem>>, %arg11: memref<2x16x128xf32, #tpu.memory_space<vmem>>) attributes {dimension_semantics = [#tpu.dimension_semantics<parallel>, #tpu.dimension_semantics<parallel>, #tpu.dimension_semantics<arbitrary>], iteration_bounds = array<i64: 2, 1, 1>, scalar_prefetch = 0 : i64, scratch_operands = 3 : i64, tpu.core_type = #tpu.core_type<tc>, window_params = [{transform_indices = @transform_0, window_bounds = array<i64: 1, 2, 16, 128>}, {transform_indices = @transform_1, window_bounds = array<i64: 1, 2, 128, 16>}, {transform_indices = @transform_2, window_bounds = array<i64: 1, 2, 16, 128>}, {transform_indices = @transform_3, window_bounds = array<i64: 1, 2, 8, 16>}, {transform_indices = @transform_4, window_bounds = array<i64: 1, 2, 16, 8>}, {transform_indices = @transform_5, window_bounds = array<i64: 1, 2, 16, 128>}]} {
    %c0 = arith.constant 0 : index
    %c0_0 = arith.constant 0 : index
    %c0_1 = arith.constant 0 : index
    %c0_2 = arith.constant 0 : index
    %0 = vector.load %arg3[%c0, %c0_0, %c0_1, %c0_2] : memref<1x2x16x128xf32, #tpu.memory_space<vmem>>, vector<1x2x16x128xf32>
    %1 = vector.shape_cast %0 : vector<1x2x16x128xf32> to vector<2x16x128xf32>
    %cst = arith.constant 2.500000e-01 : f32
    %2 = vector.broadcast %cst : f32 to vector<2x16x128xf32>
    %3 = arith.mulf %1, %2 : vector<2x16x128xf32>
    %c0_i32 = arith.constant 0 : i32
    %4 = arith.cmpi eq, %arg2, %c0_i32 : i32
    %5 = arith.extui %4 : i1 to i32
    %c0_i32_3 = arith.constant 0 : i32
    %6 = arith.cmpi ne, %5, %c0_i32_3 : i32
    scf.if %6 {
      %c0_37 = arith.constant 0 : index
      %c0_38 = arith.constant 0 : index
      %c0_39 = arith.constant 0 : index
      %c0_40 = arith.constant 0 : index
      %45 = vector.load %arg6[%c0_37, %c0_38, %c0_39, %c0_40] : memref<1x2x8x16xf32, #tpu.memory_space<vmem>>, vector<1x2x8x16xf32>
      %46 = vector.shape_cast %45 : vector<1x2x8x16xf32> to vector<2x8x16xf32>
      "tpu.trace_start"() <{level = 10 : i32, message = "hkd,hdq->hkq"}> : () -> ()
      %cst_41 = arith.constant dense<0.000000e+00> : vector<2x8x128xf32>
      %47 = tpu.matmul %46, %3, %cst_41 {dimension_numbers = #tpu.dot_dimension_numbers<[2], [1], [1], [2], [0, 0, 0, 1, 1, 2], [0], [0]>} : vector<2x8x16xf32>, vector<2x16x128xf32>, vector<2x8x128xf32> -> vector<2x8x128xf32>
      "tpu.trace_stop"() : () -> ()
      %cst_42 = arith.constant dense<0xFF800000> : vector<2x128xf32>
      %48 = vector.multi_reduction <maximumf>, %47, %cst_42 [1] : vector<2x8x128xf32> to vector<2x128xf32>
      %49 = vector.shape_cast %48 : vector<2x128xf32> to vector<2x1x128xf32>
      %50 = vector.broadcast %49 : vector<2x1x128xf32> to vector<2x8x128xf32>
      %51 = arith.subf %47, %50 : vector<2x8x128xf32>
      %52 = math.exp %51 : vector<2x8x128xf32>
      %c0_43 = arith.constant 0 : index
      %c0_44 = arith.constant 0 : index
      %c0_45 = arith.constant 0 : index
      %53 = vector.load %arg9[%c0_43, %c0_44, %c0_45] : memref<2x1x128xf32, #tpu.memory_space<vmem>>, vector<2x1x128xf32>
      tpu.vector_store %arg9[%c0_43, %c0_44, %c0_45], %49 {strides = array<i32>} : memref<2x1x128xf32, #tpu.memory_space<vmem>>, vector<2x1x128xf32>,
      %cst_46 = arith.constant dense<0.000000e+00> : vector<2x128xf32>
      %54 = vector.multi_reduction <add>, %52, %cst_46 [1] : vector<2x8x128xf32> to vector<2x128xf32>
      %55 = vector.shape_cast %54 : vector<2x128xf32> to vector<2x1x128xf32>
      %c0_47 = arith.constant 0 : index
      %c0_48 = arith.constant 0 : index
      %c0_49 = arith.constant 0 : index
      %56 = vector.load %arg10[%c0_47, %c0_48, %c0_49] : memref<2x1x128xf32, #tpu.memory_space<vmem>>, vector<2x1x128xf32>
      tpu.vector_store %arg10[%c0_47, %c0_48, %c0_49], %55 {strides = array<i32>} : memref<2x1x128xf32, #tpu.memory_space<vmem>>, vector<2x1x128xf32>,
      %c0_50 = arith.constant 0 : index
      %c0_51 = arith.constant 0 : index
      %c0_52 = arith.constant 0 : index
      %c0_53 = arith.constant 0 : index
      %57 = vector.load %arg7[%c0_50, %c0_51, %c0_52, %c0_53] : memref<1x2x16x8xf32, #tpu.memory_space<vmem>>, vector<1x2x16x8xf32>
      %58 = vector.shape_cast %57 : vector<1x2x16x8xf32> to vector<2x16x8xf32>
      "tpu.trace_start"() <{level = 10 : i32, message = "hdk,hkq->hdq"}> : () -> ()
      %cst_54 = arith.constant dense<0.000000e+00> : vector<2x16x128xf32>
      %59 = tpu.matmul %58, %52, %cst_54 {dimension_numbers = #tpu.dot_dimension_numbers<[2], [1], [1], [2], [0, 0, 0, 1, 1, 2], [0], [0]>} : vector<2x16x8xf32>, vector<2x8x128xf32>, vector<2x16x128xf32> -> vector<2x16x128xf32>
      "tpu.trace_stop"() : () -> ()
      %c0_55 = arith.constant 0 : index
      %c0_56 = arith.constant 0 : index
      %c0_57 = arith.constant 0 : index
      %60 = vector.load %arg11[%c0_55, %c0_56, %c0_57] : memref<2x16x128xf32, #tpu.memory_space<vmem>>, vector<2x16x128xf32>
      tpu.vector_store %arg11[%c0_55, %c0_56, %c0_57], %59 {strides = array<i32>} : memref<2x16x128xf32, #tpu.memory_space<vmem>>, vector<2x16x128xf32>,
    } else {
    }
    %c0_4 = arith.constant 0 : index
    %c0_5 = arith.constant 0 : index
    %c0_6 = arith.constant 0 : index
    %c0_7 = arith.constant 0 : index
    %7 = vector.load %arg4[%c0_4, %c0_5, %c0_6, %c0_7] : memref<1x2x128x16xf32, #tpu.memory_space<vmem>>, vector<1x2x128x16xf32>
    %8 = vector.shape_cast %7 : vector<1x2x128x16xf32> to vector<2x128x16xf32>
    "tpu.trace_start"() <{level = 10 : i32, message = "hkd,hdq->hkq"}> : () -> ()
    %cst_8 = arith.constant dense<0.000000e+00> : vector<2x128x128xf32>
    %9 = tpu.matmul %8, %3, %cst_8 {dimension_numbers = #tpu.dot_dimension_numbers<[2], [1], [1], [2], [0, 0, 0, 1, 1, 2], [0], [0]>} : vector<2x128x16xf32>, vector<2x16x128xf32>, vector<2x128x128xf32> -> vector<2x128x128xf32>
    "tpu.trace_stop"() : () -> ()
    %10 = tpu.iota {dimensions = array<i32: 1>} : vector<2x128x128xi32>
    %c128_i32 = arith.constant 128 : i32
    %11 = arith.muli %arg2, %c128_i32 : i32
    %12 = vector.broadcast %11 : i32 to vector<2x128x128xi32>
    %13 = arith.addi %10, %12 : vector<2x128x128xi32>
    %c16_i32 = arith.constant 16 : i32
    %14 = vector.broadcast %c16_i32 : i32 to vector<2x128x128xi32>
    %15 = arith.cmpi slt, %13, %14 : vector<2x128x128xi32>
    %cst_9 = arith.constant -2.38197633E+38 : f32
    %16 = vector.broadcast %cst_9 : f32 to vector<2x128x128xf32>
    %17 = arith.select %15, %9, %16 : vector<2x128x128xi1>, vector<2x128x128xf32>
    %c0_10 = arith.constant 0 : index
    %c0_11 = arith.constant 0 : index
    %c0_12 = arith.constant 0 : index
    %18 = vector.load %arg9[%c0_10, %c0_11, %c0_12] : memref<2x1x128xf32, #tpu.memory_space<vmem>>, vector<2x1x128xf32>
    %cst_13 = arith.constant dense<0xFF800000> : vector<2x128xf32>
    %19 = vector.multi_reduction <maximumf>, %17, %cst_13 [1] : vector<2x128x128xf32> to vector<2x128xf32>
    %20 = vector.shape_cast %19 : vector<2x128xf32> to vector<2x1x128xf32>
    %21 = arith.maximumf %18, %20 : vector<2x1x128xf32>
    %22 = arith.subf %18, %21 : vector<2x1x128xf32>
    %23 = math.exp %22 : vector<2x1x128xf32>
    %24 = vector.broadcast %21 : vector<2x1x128xf32> to vector<2x128x128xf32>
    %25 = arith.subf %17, %24 : vector<2x128x128xf32>
    %26 = math.exp %25 : vector<2x128x128xf32>
    %c0_14 = arith.constant 0 : index
    %c0_15 = arith.constant 0 : index
    %c0_16 = arith.constant 0 : index
    %27 = vector.load %arg10[%c0_14, %c0_15, %c0_16] : memref<2x1x128xf32, #tpu.memory_space<vmem>>, vector<2x1x128xf32>
    %28 = arith.mulf %23, %27 : vector<2x1x128xf32>
    %cst_17 = arith.constant dense<0.000000e+00> : vector<2x128xf32>
    %29 = vector.multi_reduction <add>, %26, %cst_17 [1] : vector<2x128x128xf32> to vector<2x128xf32>
    %30 = vector.shape_cast %29 : vector<2x128xf32> to vector<2x1x128xf32>
    %31 = arith.addf %28, %30 : vector<2x1x128xf32>
    %c0_18 = arith.constant 0 : index
    %c0_19 = arith.constant 0 : index
    %c0_20 = arith.constant 0 : index
    %32 = vector.load %arg10[%c0_18, %c0_19, %c0_20] : memref<2x1x128xf32, #tpu.memory_space<vmem>>, vector<2x1x128xf32>
    tpu.vector_store %arg10[%c0_18, %c0_19, %c0_20], %31 {strides = array<i32>} : memref<2x1x128xf32, #tpu.memory_space<vmem>>, vector<2x1x128xf32>,
    %c0_21 = arith.constant 0 : index
    %c0_22 = arith.constant 0 : index
    %c0_23 = arith.constant 0 : index
    %33 = vector.load %arg11[%c0_21, %c0_22, %c0_23] : memref<2x16x128xf32, #tpu.memory_space<vmem>>, vector<2x16x128xf32>
    %34 = vector.broadcast %23 : vector<2x1x128xf32> to vector<2x16x128xf32>
    %35 = arith.mulf %34, %33 : vector<2x16x128xf32>
    %c0_24 = arith.constant 0 : index
    %c0_25 = arith.constant 0 : index
    %c0_26 = arith.constant 0 : index
    %c0_27 = arith.constant 0 : index
    %36 = vector.load %arg5[%c0_24, %c0_25, %c0_26, %c0_27] : memref<1x2x16x128xf32, #tpu.memory_space<vmem>>, vector<1x2x16x128xf32>
    %37 = vector.shape_cast %36 : vector<1x2x16x128xf32> to vector<2x16x128xf32>
    "tpu.trace_start"() <{level = 10 : i32, message = "hdk,hkq->hdq"}> : () -> ()
    %cst_28 = arith.constant dense<0.000000e+00> : vector<2x16x128xf32>
    %38 = tpu.matmul %37, %26, %cst_28 {dimension_numbers = #tpu.dot_dimension_numbers<[2], [1], [1], [2], [0, 0, 0, 1, 1, 2], [0], [0]>} : vector<2x16x128xf32>, vector<2x128x128xf32>, vector<2x16x128xf32> -> vector<2x16x128xf32>
    "tpu.trace_stop"() : () -> ()
    %39 = arith.addf %35, %38 : vector<2x16x128xf32>
    %c0_29 = arith.constant 0 : index
    %c0_30 = arith.constant 0 : index
    %c0_31 = arith.constant 0 : index
    %40 = vector.load %arg11[%c0_29, %c0_30, %c0_31] : memref<2x16x128xf32, #tpu.memory_space<vmem>>, vector<2x16x128xf32>
    tpu.vector_store %arg11[%c0_29, %c0_30, %c0_31], %39 {strides = array<i32>} : memref<2x16x128xf32, #tpu.memory_space<vmem>>, vector<2x16x128xf32>,
    %c0_32 = arith.constant 0 : index
    %c0_33 = arith.constant 0 : index
    %c0_34 = arith.constant 0 : index
    %41 = vector.load %arg9[%c0_32, %c0_33, %c0_34] : memref<2x1x128xf32, #tpu.memory_space<vmem>>, vector<2x1x128xf32>
    tpu.vector_store %arg9[%c0_32, %c0_33, %c0_34], %21 {strides = array<i32>} : memref<2x1x128xf32, #tpu.memory_space<vmem>>, vector<2x1x128xf32>,
    %c0_i32_35 = arith.constant 0 : i32
    %42 = arith.cmpi eq, %arg2, %c0_i32_35 : i32
    %43 = arith.extui %42 : i1 to i32
    %c0_i32_36 = arith.constant 0 : i32
    %44 = arith.cmpi ne, %43, %c0_i32_36 : i32
    scf.if %44 {
      %c0_37 = arith.constant 0 : index
      %c0_38 = arith.constant 0 : index
      %c0_39 = arith.constant 0 : index
      %45 = vector.load %arg10[%c0_37, %c0_38, %c0_39] : memref<2x1x128xf32, #tpu.memory_space<vmem>>, vector<2x1x128xf32>
      %46 = tpu.reciprocal %45 : vector<2x1x128xf32> -> vector<2x1x128xf32>
      %c0_40 = arith.constant 0 : index
      %c0_41 = arith.constant 0 : index
      %c0_42 = arith.constant 0 : index
      %47 = vector.load %arg11[%c0_40, %c0_41, %c0_42] : memref<2x16x128xf32, #tpu.memory_space<vmem>>, vector<2x16x128xf32>
      %48 = vector.broadcast %46 : vector<2x1x128xf32> to vector<2x16x128xf32>
      %49 = arith.mulf %47, %48 : vector<2x16x128xf32>
      %c0_43 = arith.constant 0 : index
      %c0_44 = arith.constant 0 : index
      %c0_45 = arith.constant 0 : index
      %c0_46 = arith.constant 0 : index
      %50 = vector.load %arg8[%c0_43, %c0_44, %c0_45, %c0_46] : memref<1x2x16x128xf32, #tpu.memory_space<vmem>>, vector<1x2x16x128xf32>
      %51 = vector.shape_cast %50 : vector<1x2x16x128xf32> to vector<2x16x128xf32>
      %52 = vector.shape_cast %49 : vector<2x16x128xf32> to vector<1x2x16x128xf32>
      tpu.vector_store %arg8[%c0_43, %c0_44, %c0_45, %c0_46], %52 {strides = array<i32>} : memref<1x2x16x128xf32, #tpu.memory_space<vmem>>, vector<1x2x16x128xf32>,
    } else {
    }
    return
  }
  func.func @transform_0(%arg0: i32, %arg1: i32, %arg2: i32) -> (i32, i32, i32, i32) {
    %c0_i32 = arith.constant 0 : i32
    %c0_i32_0 = arith.constant 0 : i32
    %c0_i32_1 = arith.constant 0 : i32
    return %arg0, %c0_i32, %c0_i32_0, %arg1 : i32, i32, i32, i32
  }
  func.func @transform_1(%arg0: i32, %arg1: i32, %arg2: i32) -> (i32, i32, i32, i32) {
    %c0_i32 = arith.constant 0 : i32
    %c0_i32_0 = arith.constant 0 : i32
    %c0_i32_1 = arith.constant 0 : i32
    return %arg0, %c0_i32, %arg2, %c0_i32_0 : i32, i32, i32, i32
  }
  func.func @transform_2(%arg0: i32, %arg1: i32, %arg2: i32) -> (i32, i32, i32, i32) {
    %c0_i32 = arith.constant 0 : i32
    %c0_i32_0 = arith.constant 0 : i32
    %c0_i32_1 = arith.constant 0 : i32
    return %arg0, %c0_i32, %c0_i32_0, %arg2 : i32, i32, i32, i32
  }
  func.func @transform_3(%arg0: i32, %arg1: i32, %arg2: i32) -> (i32, i32, i32, i32) {
    %c0_i32 = arith.constant 0 : i32
    %c0_i32_0 = arith.constant 0 : i32
    %c0_i32_1 = arith.constant 0 : i32
    %c0_i32_2 = arith.constant 0 : i32
    return %arg0, %c0_i32, %c0_i32_0, %c0_i32_1 : i32, i32, i32, i32
  }
  func.func @transform_4(%arg0: i32, %arg1: i32, %arg2: i32) -> (i32, i32, i32, i32) {
    %c0_i32 = arith.constant 0 : i32
    %c0_i32_0 = arith.constant 0 : i32
    %c0_i32_1 = arith.constant 0 : i32
    %c0_i32_2 = arith.constant 0 : i32
    return %arg0, %c0_i32, %c0_i32_0, %c0_i32_1 : i32, i32, i32, i32
  }
  func.func @transform_5(%arg0: i32, %arg1: i32, %arg2: i32) -> (i32, i32, i32, i32) {
    %c0_i32 = arith.constant 0 : i32
    %c0_i32_0 = arith.constant 0 : i32
    %c0_i32_1 = arith.constant 0 : i32
    return %arg0, %c0_i32, %c0_i32_0, %arg1 : i32, i32, i32, i32
  }
}

</mosaic_0001>

<llo_original>
// kernel: adm_cross_attention.1
$region0: #{adm_cross_attention.1}
  #allocation0 [shape = 'u32[]', space=smem, size = 0x4, offset = 0x4, fixed_abs, tag = 'smem constant byte address 0x4 - core index']
  #allocation1 [shape = 'u32[72,128]{1,0:T(1,128)}', space=vmem, size = 0x9000, scoped, tag = 'internal scratch']
  #allocation2 [shape = 'f32[2,1,128]{2,1,0:T(1,128)}', space=vmem, size = 0x400, scoped, tag = 'scratch operand']
  #allocation3 [shape = 'f32[2,1,128]{2,1,0:T(1,128)}', space=vmem, size = 0x400, scoped, tag = 'scratch operand']
  #allocation4 [shape = 'f32[2,16,128]{2,1,0:T(8,128)}', space=vmem, size = 0x4000, scoped, tag = 'scratch operand']
  %s0 = inlined_call_operand.vmem [shape: f32[2,2,16,128], index: 0, kind: input, shape index: {}]
  %s1 = inlined_call_operand.vmem [shape: f32[2,2,128,16], index: 1, kind: input, shape index: {}]
  %s2 = inlined_call_operand.vmem [shape: f32[2,2,16,128], index: 2, kind: input, shape index: {}]
  %s3 = inlined_call_operand.vmem [shape: f32[2,2,8,16], index: 3, kind: input, shape index: {}]
  %s4 = inlined_call_operand.vmem [shape: f32[2,2,16,8], index: 4, kind: input, shape index: {}]
  %s5 = inlined_call_operand.vmem [shape: f32[2,2,16,128], index: 5, kind: output, shape index: {}]
  %s6 = sld [smem:[#allocation0]]
  $region61: #{adm_cross_attention.1} parent=0
    _
  %s8 = ssub.s32 1, %s6
  %s9 = scalar_select 0, %s8, %s6
  loop: start=0, step=1, limit=4
  $region2: #{adm_cross_attention.1} parent=0 // loop_pre_header
    _
  $region3: #{adm_cross_attention.1} parent=0 // loop_header
    %s11 = sphi 0, %s15
    %p12 = scmp.ge.s32.totalorder %s11, 4
    %s18 = sphi 0, %s37
    %s19 = sphi 0, %s33
    %s20 = sphi 0, %s29
    %s21 = sphi 0, %s18
    %s22 = sphi 0, %s19
    %s23 = sphi 0, %s20
    %s24 = sphi 0, %s21
    %s25 = sphi 0, %s22
    %s26 = sphi 0, %s23
    %s42 = sphi 0, %s44
    %s45 = sphi 0, %s42
    %s46 = sphi 0, %s45
    %s62 = sphi 0, %s46
    %s70 = sphi 0, %s72
    %s73 = sphi 0, %s70
    %s74 = sphi 0, %s73
    %s90 = sphi 0, %s74
    %s98 = sphi 0, %s100
    %s101 = sphi 0, %s98
    %s102 = sphi 0, %s101
    %s118 = sphi 0, %s102
    %s124 = sphi 0, %s126
    %s127 = sphi 0, %s124
    %s128 = sphi 0, %s127
    %s144 = sphi 0, %s128
    %s150 = sphi 0, %s152
    %s153 = sphi 0, %s150
    %s154 = sphi 0, %s153
    %s170 = sphi 0, %s154
    %s178 = sphi 0, %s180
    %s181 = sphi 0, %s178
    %s182 = sphi 0, %s181
    %s198 = sphi 0, %s182
  $region4: #{adm_cross_attention.1} parent=0 // loop_header_branch
    %14 = sbr.rel (%p12) target = $region8
  $region5: #{adm_cross_attention.1} parent=0 // loop_body
    %s16 = ssub.s32 %s11, 1
    %s17 = ssub.s32 %s11, 2
    %s27 = sadd.s32 1, %s20
    %p28 = scmp.ge.s32.totalorder %s27, 1
    %s29 = scalar_select %p28, 0, %s27
    %s30 = sadd.s32 1, %s19
    %s31 = scalar_select %p28, %s30, %s19
    %p32 = scmp.ge.s32.totalorder %s31, 1
    %s33 = scalar_select %p32, 0, %s31
    %s34 = sadd.s32 1, %s18
    %s35 = scalar_select %p32, %s34, %s18
    %p36 = scmp.ge.s32.totalorder %s35, 2
    %s37 = scalar_select %p36, 0, %s35
    %s38 = ssub.s32 %s18, %s37
    %s39 = ssub.s32 %s19, %s33
    %s40 = sor.u32 %s38, %s39
    %p41 = scmp.eq.s32.totalorder %s40, 0
    %s43 = sadd.s32 %s42, 1
    %s44 = scalar_select %p41, %s42, %s43
    %p47 = pneg %p41
    %p48 = scmp.eq.s32.totalorder %s11, 1
    %p49 = por %p47, %p48
    %p50 = scmp.ne.s32.totalorder %s42, %s45
    %p51 = scmp.eq.s32.totalorder %s11, 0
    %p52 = por %p50, %p51
    %p53 = scmp.ne.s32.totalorder %s42, %s45
    %p54 = scmp.eq.s32.totalorder %s16, 1
    %p55 = por %p53, %p54
    %p56 = scmp.ne.s32.totalorder %s45, %s46
    %p57 = scmp.eq.s32.totalorder %s16, 0
    %p58 = por %p56, %p57
    %p59 = scmp.ne.s32.totalorder %s45, %s46
    %p60 = scmp.eq.s32.totalorder %s17, 1
    %p61 = por %p59, %p60
    %p63 = scmp.ne.s32.totalorder %s46, %s62
    %p64 = scmp.eq.s32.totalorder %s17, 0
    %p65 = por %p63, %p64
    %s66 = ssub.s32 %s18, %s37
    %s67 = ssub.s32 %s20, %s29
    %s68 = sor.u32 %s66, %s67
    %p69 = scmp.eq.s32.totalorder %s68, 0
    %s71 = sadd.s32 %s70, 1
    %s72 = scalar_select %p69, %s70, %s71
    %p75 = pneg %p69
    %p76 = scmp.eq.s32.totalorder %s11, 1
    %p77 = por %p75, %p76
    %p78 = scmp.ne.s32.totalorder %s70, %s73
    %p79 = scmp.eq.s32.totalorder %s11, 0
    %p80 = por %p78, %p79
    %p81 = scmp.ne.s32.totalorder %s70, %s73
    %p82 = scmp.eq.s32.totalorder %s16, 1
    %p83 = por %p81, %p82
    %p84 = scmp.ne.s32.totalorder %s73, %s74
    %p85 = scmp.eq.s32.totalorder %s16, 0
    %p86 = por %p84, %p85
    %p87 = scmp.ne.s32.totalorder %s73, %s74
    %p88 = scmp.eq.s32.totalorder %s17, 1
    %p89 = por %p87, %p88
    %p91 = scmp.ne.s32.totalorder %s74, %s90
    %p92 = scmp.eq.s32.totalorder %s17, 0
    %p93 = por %p91, %p92
    %s94 = ssub.s32 %s18, %s37
    %s95 = ssub.s32 %s20, %s29
    %s96 = sor.u32 %s94, %s95
    %p97 = scmp.eq.s32.totalorder %s96, 0
    %s99 = sadd.s32 %s98, 1
    %s100 = scalar_select %p97, %s98, %s99
    %p103 = pneg %p97
    %p104 = scmp.eq.s32.totalorder %s11, 1
    %p105 = por %p103, %p104
    %p106 = scmp.ne.s32.totalorder %s98, %s101
    %p107 = scmp.eq.s32.totalorder %s11, 0
    %p108 = por %p106, %p107
    %p109 = scmp.ne.s32.totalorder %s98, %s101
    %p110 = scmp.eq.s32.totalorder %s16, 1
    %p111 = por %p109, %p110
    %p112 = scmp.ne.s32.totalorder %s101, %s102
    %p113 = scmp.eq.s32.totalorder %s16, 0
    %p114 = por %p112, %p113
    %p115 = scmp.ne.s32.totalorder %s101, %s102
    %p116 = scmp.eq.s32.totalorder %s17, 1
    %p117 = por %p115, %p116
    %p119 = scmp.ne.s32.totalorder %s102, %s118
    %p120 = scmp.eq.s32.totalorder %s17, 0
    %p121 = por %p119, %p120
    %s122 = ssub.s32 %s18, %s37
    %p123 = scmp.eq.s32.totalorder %s122, 0
    %s125 = sadd.s32 %s124, 1
    %s126 = scalar_select %p123, %s124, %s125
    %p129 = pneg %p123
    %p130 = scmp.eq.s32.totalorder %s11, 1
    %p131 = por %p129, %p130
    %p132 = scmp.ne.s32.totalorder %s124, %s127
    %p133 = scmp.eq.s32.totalorder %s11, 0
    %p134 = por %p132, %p133
    %p135 = scmp.ne.s32.totalorder %s124, %s127
    %p136 = scmp.eq.s32.totalorder %s16, 1
    %p137 = por %p135, %p136
    %p138 = scmp.ne.s32.totalorder %s127, %s128
    %p139 = scmp.eq.s32.totalorder %s16, 0
    %p140 = por %p138, %p139
    %p141 = scmp.ne.s32.totalorder %s127, %s128
    %p142 = scmp.eq.s32.totalorder %s17, 1
    %p143 = por %p141, %p142
    %p145 = scmp.ne.s32.totalorder %s128, %s144
    %p146 = scmp.eq.s32.totalorder %s17, 0
    %p147 = por %p145, %p146
    %s148 = ssub.s32 %s18, %s37
    %p149 = scmp.eq.s32.totalorder %s148, 0
    %s151 = sadd.s32 %s150, 1
    %s152 = scalar_select %p149, %s150, %s151
    %p155 = pneg %p149
    %p156 = scmp.eq.s32.totalorder %s11, 1
    %p157 = por %p155, %p156
    %p158 = scmp.ne.s32.totalorder %s150, %s153
    %p159 = scmp.eq.s32.totalorder %s11, 0
    %p160 = por %p158, %p159
    %p161 = scmp.ne.s32.totalorder %s150, %s153
    %p162 = scmp.eq.s32.totalorder %s16, 1
    %p163 = por %p161, %p162
    %p164 = scmp.ne.s32.totalorder %s153, %s154
    %p165 = scmp.eq.s32.totalorder %s16, 0
    %p166 = por %p164, %p165
    %p167 = scmp.ne.s32.totalorder %s153, %s154
    %p168 = scmp.eq.s32.totalorder %s17, 1
    %p169 = por %p167, %p168
    %p171 = scmp.ne.s32.totalorder %s154, %s170
    %p172 = scmp.eq.s32.totalorder %s17, 0
    %p173 = por %p171, %p172
    %s174 = ssub.s32 %s18, %s37
    %s175 = ssub.s32 %s19, %s33
    %s176 = sor.u32 %s174, %s175
    %p177 = scmp.eq.s32.totalorder %s176, 0
    %s179 = sadd.s32 %s178, 1
    %s180 = scalar_select %p177, %s178, %s179
    %p183 = pneg %p177
    %p184 = scmp.eq.s32.totalorder %s11, 1
    %p185 = por %p183, %p184
    %p186 = scmp.ne.s32.totalorder %s178, %s181
    %p187 = scmp.eq.s32.totalorder %s11, 0
    %p188 = por %p186, %p187
    %p189 = scmp.ne.s32.totalorder %s178, %s181
    %p190 = scmp.eq.s32.totalorder %s16, 1
    %p191 = por %p189, %p190
    %p192 = scmp.ne.s32.totalorder %s181, %s182
    %p193 = scmp.eq.s32.totalorder %s16, 0
    %p194 = por %p192, %p193
    %p195 = scmp.ne.s32.totalorder %s181, %s182
    %p196 = scmp.eq.s32.totalorder %s17, 1
    %p197 = por %p195, %p196
    %p199 = scmp.ne.s32.totalorder %s182, %s198
    %p200 = scmp.eq.s32.totalorder %s17, 0
    %p201 = por %p199, %p200
    %p202 = scmp.le.s32.totalorder 1, %s11
    %p203 = scmp.lt.s32.totalorder %s11, 3
    %p204 = pnand %p202, %p203
    %p205 = pneg %p204
    // Predicated region
    $region9: #{adm_cross_attention.1} parent=5 // pred_check
      _
    $region10: #{adm_cross_attention.1} parent=5 // pred_check_branch
      %207 = sbr.rel (%p204) target = $region12
    $region11: #{adm_cross_attention.1} parent=5 // pred_region
      %s208 = ssub.s32 %s11, 1
    $region12: #{adm_cross_attention.1} parent=5 // pred_fallthru
      _
    %p209 = scmp.lt.s32.totalorder %s11, 2
    // Predicated region
    $region13: #{adm_cross_attention.1} parent=5 // pred_check
      %p210 = pneg %p209
    $region14: #{adm_cross_attention.1} parent=5 // pred_check_branch
      %212 = sbr.rel (%p210) target = $region16
    $region15: #{adm_cross_attention.1} parent=5 // pred_region
      // Predicated region
      $region17: #{adm_cross_attention.1} parent=15 // pred_check
        %p213 = pneg %p52
      $region18: #{adm_cross_attention.1} parent=15 // pred_check_branch
        %215 = sbr.rel (%p213) target = $region20
      $region19: #{adm_cross_attention.1} parent=15 // pred_region
        %p216 = scmp.lt.s32.totalorder %s18, 1
        %s217 = scalar_select %p216, %s18, 1
        %p218 = scmp.lt.s32.totalorder %s19, 0
        %s219 = scalar_select %p218, %s19, 0
        %s220 = smul.addr %s217, 4
        %s221 = sadd.s32 %s219, %s220
        %s222 = smul.addr %s221, 8
        %s223 = scalar_lea.vmem %s0, %s222
      $region20: #{adm_cross_attention.1} parent=15 // pred_fallthru
        _
      // Predicated region
      $region21: #{adm_cross_attention.1} parent=15 // pred_check
        %p224 = pneg %p80
      $region22: #{adm_cross_attention.1} parent=15 // pred_check_branch
        %226 = sbr.rel (%p224) target = $region24
      $region23: #{adm_cross_attention.1} parent=15 // pred_region
        %s227 = smul.u32 16, %s20
        %p228 = scmp.lt.s32.totalorder %s18, 1
        %s229 = scalar_select %p228, %s18, 1
        %p230 = scmp.lt.s32.totalorder %s227, 15
        %s231 = scalar_select %p230, %s227, 15
        %s232 = smul.addr %s229, 32
        %s233 = sadd.s32 %s231, %s232
        %s234 = smul.addr %s233, 8
        %s235 = scalar_lea.vmem %s1, %s234
        %s236 = smul.u32 16, %s20
      $region24: #{adm_cross_attention.1} parent=15 // pred_fallthru
        _
      // Predicated region
      $region25: #{adm_cross_attention.1} parent=15 // pred_check
        %p237 = pneg %p108
      $region26: #{adm_cross_attention.1} parent=15 // pred_check_branch
        %239 = sbr.rel (%p237) target = $region28
      $region27: #{adm_cross_attention.1} parent=15 // pred_region
        %p240 = scmp.lt.s32.totalorder %s18, 1
        %s241 = scalar_select %p240, %s18, 1
        %p242 = scmp.lt.s32.totalorder %s20, 0
        %s243 = scalar_select %p242, %s20, 0
        %s244 = smul.addr %s241, 4
        %s245 = sadd.s32 %s243, %s244
        %s246 = smul.addr %s245, 8
        %s247 = scalar_lea.vmem %s2, %s246
      $region28: #{adm_cross_attention.1} parent=15 // pred_fallthru
        _
      // Predicated region
      $region29: #{adm_cross_attention.1} parent=15 // pred_check
        %p248 = pneg %p134
      $region30: #{adm_cross_attention.1} parent=15 // pred_check_branch
        %250 = sbr.rel (%p248) target = $region32
      $region31: #{adm_cross_attention.1} parent=15 // pred_region
        %p251 = scmp.lt.s32.totalorder %s18, 1
        %s252 = scalar_select %p251, %s18, 1
        %s253 = smul.addr %s252, 2
        %s254 = smul.addr %s253, 8
        %s255 = scalar_lea.vmem %s3, %s254
      $region32: #{adm_cross_attention.1} parent=15 // pred_fallthru
        _
      // Predicated region
      $region33: #{adm_cross_attention.1} parent=15 // pred_check
        %p256 = pneg %p160
      $region34: #{adm_cross_attention.1} parent=15 // pred_check_branch
        %258 = sbr.rel (%p256) target = $region36
      $region35: #{adm_cross_attention.1} parent=15 // pred_region
        %p259 = scmp.lt.s32.totalorder %s18, 1
        %s260 = scalar_select %p259, %s18, 1
        %s261 = smul.addr %s260, 4
        %s262 = smul.addr %s261, 8
        %s263 = scalar_lea.vmem %s4, %s262
      $region36: #{adm_cross_attention.1} parent=15 // pred_fallthru
        _
    $region16: #{adm_cross_attention.1} parent=5 // pred_fallthru
      _
    %p264 = scmp.le.s32.totalorder 1, %s11
    %p265 = scmp.lt.s32.totalorder %s11, 3
    %p266 = pnand %p264, %p265
    %p267 = pneg %p266
    // Predicated region
    $region37: #{adm_cross_attention.1} parent=5 // pred_check
      _
    $region38: #{adm_cross_attention.1} parent=5 // pred_check_branch
      %269 = sbr.rel (%p266) target = $region40
    $region39: #{adm_cross_attention.1} parent=5 // pred_region
      %s270 = ssub.s32 %s11, 1
      %p271 = scmp.lt.s32.totalorder %s21, 1
      %s272 = scalar_select %p271, %s21, 1
      %p273 = scmp.lt.s32.totalorder %s22, 0
      %s274 = scalar_select %p273, %s22, 0
      %s275 = smul.addr %s272, 4
      %s276 = sadd.s32 %s274, %s275
      %s277 = smul.addr %s276, 8
      %s278 = scalar_lea.vmem %s0, %s277
      %p279 = pneg %p58
      %p280 = pneg %p55
      %s281 = smul.u32 16, %s23
      %p282 = scmp.lt.s32.totalorder %s21, 1
      %s283 = scalar_select %p282, %s21, 1
      %p284 = scmp.lt.s32.totalorder %s281, 15
      %s285 = scalar_select %p284, %s281, 15
      %s286 = smul.addr %s283, 32
      %s287 = sadd.s32 %s285, %s286
      %s288 = smul.addr %s287, 8
      %s289 = scalar_lea.vmem %s1, %s288
      %p290 = pneg %p86
      %p291 = pneg %p83
      %p292 = scmp.lt.s32.totalorder %s21, 1
      %s293 = scalar_select %p292, %s21, 1
      %p294 = scmp.lt.s32.totalorder %s23, 0
      %s295 = scalar_select %p294, %s23, 0
      %s296 = smul.addr %s293, 4
      %s297 = sadd.s32 %s295, %s296
      %s298 = smul.addr %s297, 8
      %s299 = scalar_lea.vmem %s2, %s298
      %p300 = pneg %p114
      %p301 = pneg %p111
      %p302 = scmp.lt.s32.totalorder %s21, 1
      %s303 = scalar_select %p302, %s21, 1
      %s304 = smul.addr %s303, 2
      %s305 = smul.addr %s304, 8
      %s306 = scalar_lea.vmem %s3, %s305
      %p307 = pneg %p140
      %p308 = pneg %p137
      %p309 = scmp.lt.s32.totalorder %s21, 1
      %s310 = scalar_select %p309, %s21, 1
      %s311 = smul.addr %s310, 4
      %s312 = smul.addr %s311, 8
      %s313 = scalar_lea.vmem %s4, %s312
      %p314 = pneg %p166
      %p315 = pneg %p163
      %p316 = pneg %p194
      %p317 = pneg %p191
      %p318 = scmp.lt.s32.totalorder %s21, 1
      %s319 = scalar_select %p318, %s21, 1
      %p320 = scmp.lt.s32.totalorder %s22, 0
      %s321 = scalar_select %p320, %s22, 0
      %s322 = smul.addr %s319, 4
      %s323 = sadd.s32 %s321, %s322
      %s324 = smul.addr %s323, 8
      %s325 = scalar_lea.vmem %s5, %s324
      %p326 = scmp.lt.s32.totalorder %s21, 1
      %s327 = scalar_select %p326, %s21, 1
      %p328 = scmp.lt.s32.totalorder %s22, 0
      %s329 = scalar_select %p328, %s22, 0
      %s330 = smul.addr %s327, 4
      %s331 = sadd.s32 %s329, %s330
      %s332 = smul.addr %s331, 8
      %s333 = scalar_lea.vmem %s0, %s332
      %s334 = smul.u32 16, %s23
      %p335 = scmp.lt.s32.totalorder %s21, 1
      %s336 = scalar_select %p335, %s21, 1
      %p337 = scmp.lt.s32.totalorder %s334, 15
      %s338 = scalar_select %p337, %s334, 15
      %s339 = smul.addr %s336, 32
      %s340 = sadd.s32 %s338, %s339
      %s341 = smul.addr %s340, 8
      %s342 = scalar_lea.vmem %s1, %s341
      %s343 = smul.u32 16, %s23
      %p344 = scmp.lt.s32.totalorder %s21, 1
      %s345 = scalar_select %p344, %s21, 1
      %p346 = scmp.lt.s32.totalorder %s23, 0
      %s347 = scalar_select %p346, %s23, 0
      %s348 = smul.addr %s345, 4
      %s349 = sadd.s32 %s347, %s348
      %s350 = smul.addr %s349, 8
      %s351 = scalar_lea.vmem %s2, %s350
      %p352 = scmp.lt.s32.totalorder %s21, 1
      %s353 = scalar_select %p352, %s21, 1
      %s354 = smul.addr %s353, 2
      %s355 = smul.addr %s354, 8
      %s356 = scalar_lea.vmem %s3, %s355
      %p357 = scmp.lt.s32.totalorder %s21, 1
      %s358 = scalar_select %p357, %s21, 1
      %s359 = smul.addr %s358, 4
      %s360 = smul.addr %s359, 8
      %s361 = scalar_lea.vmem %s4, %s360
      %p362 = scmp.lt.s32.totalorder %s21, 1
      %s363 = scalar_select %p362, %s21, 1
      %p364 = scmp.lt.s32.totalorder %s22, 0
      %s365 = scalar_select %p364, %s22, 0
      %s366 = smul.addr %s363, 4
      %s367 = sadd.s32 %s365, %s366
      %s368 = smul.addr %s367, 8
      %s369 = scalar_lea.vmem %s5, %s368
      %v370 = vld [vmem:[%s333] sm:$0xff]
      %v371 = vld [vmem:[%s333 + $0x8] sm:$0xff]
      %v372 = vld [vmem:[%s333 + $0x10] sm:$0xff]
      %v373 = vld [vmem:[%s333 + $0x18] sm:$0xff]
      %v374 = vmul.f32 %v370, 0.25
      %v375 = vmul.f32 %v371, 0.25
      %v376 = vmul.f32 %v372, 0.25
      %v377 = vmul.f32 %v373, 0.25
      %p378 = scmp.eq.s32.totalorder %s23, 0
      // Predicated region
      $region41: #{adm_cross_attention.1} parent=39 // pred_check
        %p379 = pneg %p378
      $region42: #{adm_cross_attention.1} parent=39 // pred_check_branch
        %381 = sbr.rel (%p379) target = $region44
      $region43: #{adm_cross_attention.1} parent=39 // pred_region
        %v382 = vld [vmem:[%s356] sm:$0xff]
        %v383 = vld [vmem:[%s356 + $0x8] sm:$0xff]
        %vm384 = vcmask 130048
        %v386 = vsel %vm384, %v382, 0
        %388 = vmatpush.msra.mxu0 0.0
        %389 = vmatpush.msra.mxu0 0.0
        %390 = vmatpush.msra.mxu0 0.0
        %391 = vmatpush.msra.mxu0 0.0
        %392 = vmatpush.msra.mxu0 0.0
        %393 = vmatpush.msra.mxu0 0.0
        %394 = vmatpush.msra.mxu0 0.0
        %395 = vmatpush.msra.mxu0 0.0
        %396 = vmatpush.msra.mxu0 0.0
        %397 = vmatpush.msra.mxu0 0.0
        %398 = vmatpush.msra.mxu0 0.0
        %399 = vmatpush.msra.mxu0 0.0
        %400 = vmatpush.msra.mxu0 0.0
        %401 = vmatpush.msra.mxu0 0.0
        %402 = vmatpush.msra.mxu0 %v375
        %403 = vmatpush.msra.mxu0 %v374
        %404 = vmatmul.f32.gmra.mxu0 %v386
        %v405 = vpop.f32.mrf.mxu0
        %v406 = vadd.f32 0.0, %v405
        %407 = vdwg.mxu0
        %v409 = vsel %vm384, %v383, 0
        %411 = vmatpush.msra.mxu0 0.0
        %412 = vmatpush.msra.mxu0 0.0
        %413 = vmatpush.msra.mxu0 0.0
        %414 = vmatpush.msra.mxu0 0.0
        %415 = vmatpush.msra.mxu0 0.0
        %416 = vmatpush.msra.mxu0 0.0
        %417 = vmatpush.msra.mxu0 0.0
        %418 = vmatpush.msra.mxu0 0.0
        %419 = vmatpush.msra.mxu0 0.0
        %420 = vmatpush.msra.mxu0 0.0
        %421 = vmatpush.msra.mxu0 0.0
        %422 = vmatpush.msra.mxu0 0.0
        %423 = vmatpush.msra.mxu0 0.0
        %424 = vmatpush.msra.mxu0 0.0
        %425 = vmatpush.msra.mxu0 %v377
        %426 = vmatpush.msra.mxu0 %v376
        %427 = vmatmul.f32.gmra.mxu0 %v409
        %v428 = vpop.f32.mrf.mxu0
        %v429 = vadd.f32 0.0, %v428
        %430 = vdwg.mxu0
        %v431 = vrot.slane %v406, 4
        %v432 = vmax.f32 %v406, %v431
        %v433 = vrot.slane %v432, 2
        %v434 = vmax.f32 %v432, %v433
        %v435 = vrot.slane %v434, 1
        %v436 = vmax.f32 %v434, %v435
        %v437 = vrot.slane %v429, 4
        %v438 = vmax.f32 %v429, %v437
        %v439 = vrot.slane %v438, 2
        %v440 = vmax.f32 %v438, %v439
        %v441 = vrot.slane %v440, 1
        %v442 = vmax.f32 %v440, %v441
        %v443 = vsub.f32 %v406, %v436
        %v444 = vsub.f32 %v429, %v442
        %v445 = vmul.f32 %v443, 1.442695
        %v446 = vpow.pop %v445
        %v447 = vmul.f32 %v444, 1.442695
        %v448 = vpow.pop %v447
        %449 = vst [vmem:[#allocation2] sm:$0x1] %v436
        %450 = vst [vmem:[#allocation2 + $0x1] sm:$0x1] %v442
        %v451 = vrot.slane %v446, 4
        %v452 = vadd.f32 %v446, %v451
        %v453 = vrot.slane %v452, 2
        %v454 = vadd.f32 %v452, %v453
        %v455 = vrot.slane %v454, 1
        %v456 = vadd.f32 %v454, %v455
        %v457 = vrot.slane %v448, 4
        %v458 = vadd.f32 %v448, %v457
        %v459 = vrot.slane %v458, 2
        %v460 = vadd.f32 %v458, %v459
        %v461 = vrot.slane %v460, 1
        %v462 = vadd.f32 %v460, %v461
        %463 = vst [vmem:[#allocation3] sm:$0x1] %v456
        %464 = vst [vmem:[#allocation3 + $0x1] sm:$0x1] %v462
        %v465 = vld [vmem:[%s361] sm:$0xff]
        %v466 = vld [vmem:[%s361 + $0x8] sm:$0xff]
        %v467 = vld [vmem:[%s361 + $0x10] sm:$0xff]
        %v468 = vld [vmem:[%s361 + $0x18] sm:$0xff]
        %vm469 = vcmask 64512
        %v471 = vsel %vm469, %v465, 0
        %v474 = vsel %vm469, %v466, 0
        %476 = vmatpush.msra.mxu0 0.0
        %477 = vmatpush.msra.mxu0 0.0
        %478 = vmatpush.msra.mxu0 0.0
        %479 = vmatpush.msra.mxu0 0.0
        %480 = vmatpush.msra.mxu0 0.0
        %481 = vmatpush.msra.mxu0 0.0
        %482 = vmatpush.msra.mxu0 0.0
        %483 = vmatpush.msra.mxu0 0.0
        %484 = vmatpush.msra.mxu0 0.0
        %485 = vmatpush.msra.mxu0 0.0
        %486 = vmatpush.msra.mxu0 0.0
        %487 = vmatpush.msra.mxu0 0.0
        %488 = vmatpush.msra.mxu0 0.0
        %489 = vmatpush.msra.mxu0 0.0
        %490 = vmatpush.msra.mxu0 0.0
        %491 = vmatpush.msra.mxu0 %v446
        %492 = vmatmul.f32.gmra.mxu0 %v471
        %v493 = vpop.f32.mrf.mxu0
        %v494 = vadd.f32 0.0, %v493
        %495 = vmatmul.f32.gmra.mxu0 %v474
        %v496 = vpop.f32.mrf.mxu0
        %v497 = vadd.f32 0.0, %v496
        %498 = vdwg.mxu0
        %v500 = vsel %vm469, %v467, 0
        %v503 = vsel %vm469, %v468, 0
        %505 = vmatpush.msra.mxu0 0.0
        %506 = vmatpush.msra.mxu0 0.0
        %507 = vmatpush.msra.mxu0 0.0
        %508 = vmatpush.msra.mxu0 0.0
        %509 = vmatpush.msra.mxu0 0.0
        %510 = vmatpush.msra.mxu0 0.0
        %511 = vmatpush.msra.mxu0 0.0
        %512 = vmatpush.msra.mxu0 0.0
        %513 = vmatpush.msra.mxu0 0.0
        %514 = vmatpush.msra.mxu0 0.0
        %515 = vmatpush.msra.mxu0 0.0
        %516 = vmatpush.msra.mxu0 0.0
        %517 = vmatpush.msra.mxu0 0.0
        %518 = vmatpush.msra.mxu0 0.0
        %519 = vmatpush.msra.mxu0 0.0
        %520 = vmatpush.msra.mxu0 %v448
        %521 = vmatmul.f32.gmra.mxu0 %v500
        %v522 = vpop.f32.mrf.mxu0
        %v523 = vadd.f32 0.0, %v522
        %524 = vmatmul.f32.gmra.mxu0 %v503
        %v525 = vpop.f32.mrf.mxu0
        %v526 = vadd.f32 0.0, %v525
        %527 = vdwg.mxu0
        %528 = vst [vmem:[#allocation4] sm:$0xff] %v494
        %529 = vst [vmem:[#allocation4 + $0x8] sm:$0xff] %v497
        %530 = vst [vmem:[#allocation4 + $0x10] sm:$0xff] %v523
        %531 = vst [vmem:[#allocation4 + $0x18] sm:$0xff] %v526
      $region44: #{adm_cross_attention.1} parent=39 // pred_fallthru
        _
      %v532 = vld [vmem:[%s342] sm:$0xff]
      %v533 = vld [vmem:[%s342 + $0x8] sm:$0xff]
      %v534 = vld [vmem:[%s342 + $0x10] sm:$0xff]
      %v535 = vld [vmem:[%s342 + $0x18] sm:$0xff]
      %v536 = vld [vmem:[%s342 + $0x20] sm:$0xff]
      %v537 = vld [vmem:[%s342 + $0x28] sm:$0xff]
      %v538 = vld [vmem:[%s342 + $0x30] sm:$0xff]
      %v539 = vld [vmem:[%s342 + $0x38] sm:$0xff]
      %v540 = vld [vmem:[%s342 + $0x40] sm:$0xff]
      %v541 = vld [vmem:[%s342 + $0x48] sm:$0xff]
      %v542 = vld [vmem:[%s342 + $0x50] sm:$0xff]
      %v543 = vld [vmem:[%s342 + $0x58] sm:$0xff]
      %v544 = vld [vmem:[%s342 + $0x60] sm:$0xff]
      %v545 = vld [vmem:[%s342 + $0x68] sm:$0xff]
      %v546 = vld [vmem:[%s342 + $0x70] sm:$0xff]
      %v547 = vld [vmem:[%s342 + $0x78] sm:$0xff]
      %v548 = vld [vmem:[%s342 + $0x80] sm:$0xff]
      %v549 = vld [vmem:[%s342 + $0x88] sm:$0xff]
      %v550 = vld [vmem:[%s342 + $0x90] sm:$0xff]
      %v551 = vld [vmem:[%s342 + $0x98] sm:$0xff]
      %v552 = vld [vmem:[%s342 + $0xa0] sm:$0xff]
      %v553 = vld [vmem:[%s342 + $0xa8] sm:$0xff]
      %v554 = vld [vmem:[%s342 + $0xb0] sm:$0xff]
      %v555 = vld [vmem:[%s342 + $0xb8] sm:$0xff]
      %v556 = vld [vmem:[%s342 + $0xc0] sm:$0xff]
      %v557 = vld [vmem:[%s342 + $0xc8] sm:$0xff]
      %v558 = vld [vmem:[%s342 + $0xd0] sm:$0xff]
      %v559 = vld [vmem:[%s342 + $0xd8] sm:$0xff]
      %v560 = vld [vmem:[%s342 + $0xe0] sm:$0xff]
      %v561 = vld [vmem:[%s342 + $0xe8] sm:$0xff]
      %v562 = vld [vmem:[%s342 + $0xf0] sm:$0xff]
      %v563 = vld [vmem:[%s342 + $0xf8] sm:$0xff]
      %vm564 = vcmask 130048
      %v566 = vsel %vm564, %v532, 0
      %v569 = vsel %vm564, %v533, 0
      %v572 = vsel %vm564, %v534, 0
      %v575 = vsel %vm564, %v535, 0
      %v578 = vsel %vm564, %v536, 0
      %v581 = vsel %vm564, %v537, 0
      %v584 = vsel %vm564, %v538, 0
      %v587 = vsel %vm564, %v539, 0
      %v590 = vsel %vm564, %v540, 0
      %v593 = vsel %vm564, %v541, 0
      %v596 = vsel %vm564, %v542, 0
      %v599 = vsel %vm564, %v543, 0
      %v602 = vsel %vm564, %v544, 0
      %v605 = vsel %vm564, %v545, 0
      %v608 = vsel %vm564, %v546, 0
      %v611 = vsel %vm564, %v547, 0
      %613 = vmatpush.msra.mxu0 0.0
      %614 = vmatpush.msra.mxu0 0.0
      %615 = vmatpush.msra.mxu0 0.0
      %616 = vmatpush.msra.mxu0 0.0
      %617 = vmatpush.msra.mxu0 0.0
      %618 = vmatpush.msra.mxu0 0.0
      %619 = vmatpush.msra.mxu0 0.0
      %620 = vmatpush.msra.mxu0 0.0
      %621 = vmatpush.msra.mxu0 0.0
      %622 = vmatpush.msra.mxu0 0.0
      %623 = vmatpush.msra.mxu0 0.0
      %624 = vmatpush.msra.mxu0 0.0
      %625 = vmatpush.msra.mxu0 0.0
      %626 = vmatpush.msra.mxu0 0.0
      %627 = vmatpush.msra.mxu0 %v375
      %628 = vmatpush.msra.mxu0 %v374
      %629 = vmatmul.f32.gmra.mxu0 %v566
      %v630 = vpop.f32.mrf.mxu0
      %v631 = vadd.f32 0.0, %v630
      %632 = vmatmul.f32.gmra.mxu0 %v569
      %v633 = vpop.f32.mrf.mxu0
      %v634 = vadd.f32 0.0, %v633
      %635 = vmatmul.f32.gmra.mxu0 %v572
      %v636 = vpop.f32.mrf.mxu0
      %v637 = vadd.f32 0.0, %v636
      %638 = vmatmul.f32.gmra.mxu0 %v575
      %v639 = vpop.f32.mrf.mxu0
      %v640 = vadd.f32 0.0, %v639
      %641 = vmatmul.f32.gmra.mxu0 %v578
      %v642 = vpop.f32.mrf.mxu0
      %v643 = vadd.f32 0.0, %v642
      %644 = vmatmul.f32.gmra.mxu0 %v581
      %v645 = vpop.f32.mrf.mxu0
      %v646 = vadd.f32 0.0, %v645
      %647 = vmatmul.f32.gmra.mxu0 %v584
      %v648 = vpop.f32.mrf.mxu0
      %v649 = vadd.f32 0.0, %v648
      %650 = vmatmul.f32.gmra.mxu0 %v587
      %v651 = vpop.f32.mrf.mxu0
      %v652 = vadd.f32 0.0, %v651
      %653 = vmatmul.f32.gmra.mxu0 %v590
      %v654 = vpop.f32.mrf.mxu0
      %v655 = vadd.f32 0.0, %v654
      %656 = vmatmul.f32.gmra.mxu0 %v593
      %v657 = vpop.f32.mrf.mxu0
      %v658 = vadd.f32 0.0, %v657
      %659 = vmatmul.f32.gmra.mxu0 %v596
      %v660 = vpop.f32.mrf.mxu0
      %v661 = vadd.f32 0.0, %v660
      %662 = vmatmul.f32.gmra.mxu0 %v599
      %v663 = vpop.f32.mrf.mxu0
      %v664 = vadd.f32 0.0, %v663
      %665 = vmatmul.f32.gmra.mxu0 %v602
      %v666 = vpop.f32.mrf.mxu0
      %v667 = vadd.f32 0.0, %v666
      %668 = vmatmul.f32.gmra.mxu0 %v605
      %v669 = vpop.f32.mrf.mxu0
      %v670 = vadd.f32 0.0, %v669
      %671 = vmatmul.f32.gmra.mxu0 %v608
      %v672 = vpop.f32.mrf.mxu0
      %v673 = vadd.f32 0.0, %v672
      %674 = vmatmul.f32.gmra.mxu0 %v611
      %v675 = vpop.f32.mrf.mxu0
      %v676 = vadd.f32 0.0, %v675
      %677 = vdwg.mxu0
      %v679 = vsel %vm564, %v548, 0
      %v682 = vsel %vm564, %v549, 0
      %v685 = vsel %vm564, %v550, 0
      %v688 = vsel %vm564, %v551, 0
      %v691 = vsel %vm564, %v552, 0
      %v694 = vsel %vm564, %v553, 0
      %v697 = vsel %vm564, %v554, 0
      %v700 = vsel %vm564, %v555, 0
      %v703 = vsel %vm564, %v556, 0
      %v706 = vsel %vm564, %v557, 0
      %v709 = vsel %vm564, %v558, 0
      %v712 = vsel %vm564, %v559, 0
      %v715 = vsel %vm564, %v560, 0
      %v718 = vsel %vm564, %v561, 0
      %v721 = vsel %vm564, %v562, 0
      %v724 = vsel %vm564, %v563, 0
      %726 = vmatpush.msra.mxu0 0.0
      %727 = vmatpush.msra.mxu0 0.0
      %728 = vmatpush.msra.mxu0 0.0
      %729 = vmatpush.msra.mxu0 0.0
      %730 = vmatpush.msra.mxu0 0.0
      %731 = vmatpush.msra.mxu0 0.0
      %732 = vmatpush.msra.mxu0 0.0
      %733 = vmatpush.msra.mxu0 0.0
      %734 = vmatpush.msra.mxu0 0.0
      %735 = vmatpush.msra.mxu0 0.0
      %736 = vmatpush.msra.mxu0 0.0
      %737 = vmatpush.msra.mxu0 0.0
      %738 = vmatpush.msra.mxu0 0.0
      %739 = vmatpush.msra.mxu0 0.0
      %740 = vmatpush.msra.mxu0 %v377
      %741 = vmatpush.msra.mxu0 %v376
      %742 = vmatmul.f32.gmra.mxu0 %v679
      %v743 = vpop.f32.mrf.mxu0
      %v744 = vadd.f32 0.0, %v743
      %745 = vmatmul.f32.gmra.mxu0 %v682
      %v746 = vpop.f32.mrf.mxu0
      %v747 = vadd.f32 0.0, %v746
      %748 = vmatmul.f32.gmra.mxu0 %v685
      %v749 = vpop.f32.mrf.mxu0
      %v750 = vadd.f32 0.0, %v749
      %751 = vmatmul.f32.gmra.mxu0 %v688
      %v752 = vpop.f32.mrf.mxu0
      %v753 = vadd.f32 0.0, %v752
      %754 = vmatmul.f32.gmra.mxu0 %v691
      %v755 = vpop.f32.mrf.mxu0
      %v756 = vadd.f32 0.0, %v755
      %757 = vmatmul.f32.gmra.mxu0 %v694
      %v758 = vpop.f32.mrf.mxu0
      %v759 = vadd.f32 0.0, %v758
      %760 = vmatmul.f32.gmra.mxu0 %v697
      %v761 = vpop.f32.mrf.mxu0
      %v762 = vadd.f32 0.0, %v761
      %763 = vmatmul.f32.gmra.mxu0 %v700
      %v764 = vpop.f32.mrf.mxu0
      %v765 = vadd.f32 0.0, %v764
      %766 = vmatmul.f32.gmra.mxu0 %v703
      %v767 = vpop.f32.mrf.mxu0
      %v768 = vadd.f32 0.0, %v767
      %769 = vmatmul.f32.gmra.mxu0 %v706
      %v770 = vpop.f32.mrf.mxu0
      %v771 = vadd.f32 0.0, %v770
      %772 = vmatmul.f32.gmra.mxu0 %v709
      %v773 = vpop.f32.mrf.mxu0
      %v774 = vadd.f32 0.0, %v773
      %775 = vmatmul.f32.gmra.mxu0 %v712
      %v776 = vpop.f32.mrf.mxu0
      %v777 = vadd.f32 0.0, %v776
      %778 = vmatmul.f32.gmra.mxu0 %v715
      %v779 = vpop.f32.mrf.mxu0
      %v780 = vadd.f32 0.0, %v779
      %781 = vmatmul.f32.gmra.mxu0 %v718
      %v782 = vpop.f32.mrf.mxu0
      %v783 = vadd.f32 0.0, %v782
      %784 = vmatmul.f32.gmra.mxu0 %v721
      %v785 = vpop.f32.mrf.mxu0
      %v786 = vadd.f32 0.0, %v785
      %787 = vmatmul.f32.gmra.mxu0 %v724
      %v788 = vpop.f32.mrf.mxu0
      %v789 = vadd.f32 0.0, %v788
      %790 = vdwg.mxu0
      %v791 = vlaneseq
      %v792 = vshrl.u32 %v791, 7
      %v793 = vadd.s32 %v792, 8
      %v794 = vadd.s32 %v792, 16
      %v795 = vadd.s32 %v792, 24
      %v796 = vadd.s32 %v792, 32
      %v797 = vadd.s32 %v792, 40
      %v798 = vadd.s32 %v792, 48
      %v799 = vadd.s32 %v792, 56
      %v800 = vadd.s32 %v792, 64
      %v801 = vadd.s32 %v792, 72
      %v802 = vadd.s32 %v792, 80
      %v803 = vadd.s32 %v792, 88
      %v804 = vadd.s32 %v792, 96
      %v805 = vadd.s32 %v792, 104
      %v806 = vadd.s32 %v792, 112
      %v807 = vadd.s32 %v792, 120
      %s808 = smul.u32 %s23, 128
      %v809 = vstv %s808
      %v810 = vadd.s32 %v792, %v809
      %v811 = vadd.s32 %v793, %v809
      %v812 = vadd.s32 %v794, %v809
      %v813 = vadd.s32 %v795, %v809
      %v814 = vadd.s32 %v796, %v809
      %v815 = vadd.s32 %v797, %v809
      %v816 = vadd.s32 %v798, %v809
      %v817 = vadd.s32 %v799, %v809
      %v818 = vadd.s32 %v800, %v809
      %v819 = vadd.s32 %v801, %v809
      %v820 = vadd.s32 %v802, %v809
      %v821 = vadd.s32 %v803, %v809
      %v822 = vadd.s32 %v804, %v809
      %v823 = vadd.s32 %v805, %v809
      %v824 = vadd.s32 %v806, %v809
      %v825 = vadd.s32 %v807, %v809
      %vm826 = vcmp.lt.s32.totalorder %v810, 16
      %vm827 = vcmp.lt.s32.totalorder %v811, 16
      %vm828 = vcmp.lt.s32.totalorder %v812, 16
      %vm829 = vcmp.lt.s32.totalorder %v813, 16
      %vm830 = vcmp.lt.s32.totalorder %v814, 16
      %vm831 = vcmp.lt.s32.totalorder %v815, 16
      %vm832 = vcmp.lt.s32.totalorder %v816, 16
      %vm833 = vcmp.lt.s32.totalorder %v817, 16
      %vm834 = vcmp.lt.s32.totalorder %v818, 16
      %vm835 = vcmp.lt.s32.totalorder %v819, 16
      %vm836 = vcmp.lt.s32.totalorder %v820, 16
      %vm837 = vcmp.lt.s32.totalorder %v821, 16
      %vm838 = vcmp.lt.s32.totalorder %v822, 16
      %vm839 = vcmp.lt.s32.totalorder %v823, 16
      %vm840 = vcmp.lt.s32.totalorder %v824, 16
      %vm841 = vcmp.lt.s32.totalorder %v825, 16
      %v842 = vsel %vm826, %v631, -2.3819763e+38
      %v843 = vsel %vm827, %v634, -2.3819763e+38
      %v844 = vsel %vm828, %v637, -2.3819763e+38
      %v845 = vsel %vm829, %v640, -2.3819763e+38
      %v846 = vsel %vm830, %v643, -2.3819763e+38
      %v847 = vsel %vm831, %v646, -2.3819763e+38
      %v848 = vsel %vm832, %v649, -2.3819763e+38
      %v849 = vsel %vm833, %v652, -2.3819763e+38
      %v850 = vsel %vm834, %v655, -2.3819763e+38
      %v851 = vsel %vm835, %v658, -2.3819763e+38
      %v852 = vsel %vm836, %v661, -2.3819763e+38
      %v853 = vsel %vm837, %v664, -2.3819763e+38
      %v854 = vsel %vm838, %v667, -2.3819763e+38
      %v855 = vsel %vm839, %v670, -2.3819763e+38
      %v856 = vsel %vm840, %v673, -2.3819763e+38
      %v857 = vsel %vm841, %v676, -2.3819763e+38
      %v858 = vsel %vm826, %v744, -2.3819763e+38
      %v859 = vsel %vm827, %v747, -2.3819763e+38
      %v860 = vsel %vm828, %v750, -2.3819763e+38
      %v861 = vsel %vm829, %v753, -2.3819763e+38
      %v862 = vsel %vm830, %v756, -2.3819763e+38
      %v863 = vsel %vm831, %v759, -2.3819763e+38
      %v864 = vsel %vm832, %v762, -2.3819763e+38
      %v865 = vsel %vm833, %v765, -2.3819763e+38
      %v866 = vsel %vm834, %v768, -2.3819763e+38
      %v867 = vsel %vm835, %v771, -2.3819763e+38
      %v868 = vsel %vm836, %v774, -2.3819763e+38
      %v869 = vsel %vm837, %v777, -2.3819763e+38
      %v870 = vsel %vm838, %v780, -2.3819763e+38
      %v871 = vsel %vm839, %v783, -2.3819763e+38
      %v872 = vsel %vm840, %v786, -2.3819763e+38
      %v873 = vsel %vm841, %v789, -2.3819763e+38
      %v874 = vld [vmem:[#allocation2] sm:$0x1]
      %v875 = vld [vmem:[#allocation2 + $0x1] sm:$0x1]
      %v876 = vmax.f32 %v842, %v844
      %v877 = vmax.f32 %v843, %v845
      %v878 = vmax.f32 %v876, %v846
      %v879 = vmax.f32 %v877, %v847
      %v880 = vmax.f32 %v878, %v848
      %v881 = vmax.f32 %v879, %v849
      %v882 = vmax.f32 %v880, %v850
      %v883 = vmax.f32 %v881, %v851
      %v884 = vmax.f32 %v882, %v852
      %v885 = vmax.f32 %v883, %v853
      %v886 = vmax.f32 %v884, %v854
      %v887 = vmax.f32 %v885, %v855
      %v888 = vmax.f32 %v886, %v856
      %v889 = vmax.f32 %v887, %v857
      %v890 = vmax.f32 %v888, %v889
      %v891 = vrot.slane %v890, 4
      %v892 = vmax.f32 %v890, %v891
      %v893 = vrot.slane %v892, 2
      %v894 = vmax.f32 %v892, %v893
      %v895 = vrot.slane %v894, 1
      %v896 = vmax.f32 %v894, %v895
      %v897 = vmax.f32 %v858, %v860
      %v898 = vmax.f32 %v859, %v861
      %v899 = vmax.f32 %v897, %v862
      %v900 = vmax.f32 %v898, %v863
      %v901 = vmax.f32 %v899, %v864
      %v902 = vmax.f32 %v900, %v865
      %v903 = vmax.f32 %v901, %v866
      %v904 = vmax.f32 %v902, %v867
      %v905 = vmax.f32 %v903, %v868
      %v906 = vmax.f32 %v904, %v869
      %v907 = vmax.f32 %v905, %v870
      %v908 = vmax.f32 %v906, %v871
      %v909 = vmax.f32 %v907, %v872
      %v910 = vmax.f32 %v908, %v873
      %v911 = vmax.f32 %v909, %v910
      %v912 = vrot.slane %v911, 4
      %v913 = vmax.f32 %v911, %v912
      %v914 = vrot.slane %v913, 2
      %v915 = vmax.f32 %v913, %v914
      %v916 = vrot.slane %v915, 1
      %v917 = vmax.f32 %v915, %v916
      %v918 = vmax.f32 %v874, %v896
      %v919 = vmax.f32 %v875, %v917
      %v920 = vsub.f32 %v874, %v918
      %v921 = vsub.f32 %v875, %v919
      %v922 = vmul.f32 %v920, 1.442695
      %v923 = vpow.pop %v922
      %v924 = vmul.f32 %v921, 1.442695
      %v925 = vpow.pop %v924
      %v928 = vperm.slane %v918, 0
      %v929 = vperm.slane %v919, 0
      %v932 = vsub.f32 %v842, %v928
      %v933 = vsub.f32 %v843, %v928
      %v934 = vsub.f32 %v844, %v928
      %v935 = vsub.f32 %v845, %v928
      %v936 = vsub.f32 %v846, %v928
      %v937 = vsub.f32 %v847, %v928
      %v938 = vsub.f32 %v848, %v928
      %v939 = vsub.f32 %v849, %v928
      %v940 = vsub.f32 %v850, %v928
      %v941 = vsub.f32 %v851, %v928
      %v942 = vsub.f32 %v852, %v928
      %v943 = vsub.f32 %v853, %v928
      %v944 = vsub.f32 %v854, %v928
      %v945 = vsub.f32 %v855, %v928
      %v946 = vsub.f32 %v856, %v928
      %v947 = vsub.f32 %v857, %v928
      %v948 = vsub.f32 %v858, %v929
      %v949 = vsub.f32 %v859, %v929
      %v950 = vsub.f32 %v860, %v929
      %v951 = vsub.f32 %v861, %v929
      %v952 = vsub.f32 %v862, %v929
      %v953 = vsub.f32 %v863, %v929
      %v954 = vsub.f32 %v864, %v929
      %v955 = vsub.f32 %v865, %v929
      %v956 = vsub.f32 %v866, %v929
      %v957 = vsub.f32 %v867, %v929
      %v958 = vsub.f32 %v868, %v929
      %v959 = vsub.f32 %v869, %v929
      %v960 = vsub.f32 %v870, %v929
      %v961 = vsub.f32 %v871, %v929
      %v962 = vsub.f32 %v872, %v929
      %v963 = vsub.f32 %v873, %v929
      %v964 = vmul.f32 %v932, 1.442695
      %v965 = vpow.pop %v964
      %v966 = vmul.f32 %v933, 1.442695
      %v967 = vpow.pop %v966
      %v968 = vmul.f32 %v934, 1.442695
      %v969 = vpow.pop %v968
      %v970 = vmul.f32 %v935, 1.442695
      %v971 = vpow.pop %v970
      %v972 = vmul.f32 %v936, 1.442695
      %v973 = vpow.pop %v972
      %v974 = vmul.f32 %v937, 1.442695
      %v975 = vpow.pop %v974
      %v976 = vmul.f32 %v938, 1.442695
      %v977 = vpow.pop %v976
      %v978 = vmul.f32 %v939, 1.442695
      %v979 = vpow.pop %v978
      %v980 = vmul.f32 %v940, 1.442695
      %v981 = vpow.pop %v980
      %v982 = vmul.f32 %v941, 1.442695
      %v983 = vpow.pop %v982
      %v984 = vmul.f32 %v942, 1.442695
      %v985 = vpow.pop %v984
      %v986 = vmul.f32 %v943, 1.442695
      %v987 = vpow.pop %v986
      %v988 = vmul.f32 %v944, 1.442695
      %v989 = vpow.pop %v988
      %v990 = vmul.f32 %v945, 1.442695
      %v991 = vpow.pop %v990
      %v992 = vmul.f32 %v946, 1.442695
      %v993 = vpow.pop %v992
      %v994 = vmul.f32 %v947, 1.442695
      %v995 = vpow.pop %v994
      %v996 = vmul.f32 %v948, 1.442695
      %v997 = vpow.pop %v996
      %v998 = vmul.f32 %v949, 1.442695
      %v999 = vpow.pop %v998
      %v1000 = vmul.f32 %v950, 1.442695
      %v1001 = vpow.pop %v1000
      %v1002 = vmul.f32 %v951, 1.442695
      %v1003 = vpow.pop %v1002
      %v1004 = vmul.f32 %v952, 1.442695
      %v1005 = vpow.pop %v1004
      %v1006 = vmul.f32 %v953, 1.442695
      %v1007 = vpow.pop %v1006
      %v1008 = vmul.f32 %v954, 1.442695
      %v1009 = vpow.pop %v1008
      %v1010 = vmul.f32 %v955, 1.442695
      %v1011 = vpow.pop %v1010
      %v1012 = vmul.f32 %v956, 1.442695
      %v1013 = vpow.pop %v1012
      %v1014 = vmul.f32 %v957, 1.442695
      %v1015 = vpow.pop %v1014
      %v1016 = vmul.f32 %v958, 1.442695
      %v1017 = vpow.pop %v1016
      %v1018 = vmul.f32 %v959, 1.442695
      %v1019 = vpow.pop %v1018
      %v1020 = vmul.f32 %v960, 1.442695
      %v1021 = vpow.pop %v1020
      %v1022 = vmul.f32 %v961, 1.442695
      %v1023 = vpow.pop %v1022
      %v1024 = vmul.f32 %v962, 1.442695
      %v1025 = vpow.pop %v1024
      %v1026 = vmul.f32 %v963, 1.442695
      %v1027 = vpow.pop %v1026
      %v1028 = vld [vmem:[#allocation3] sm:$0x1]
      %v1029 = vld [vmem:[#allocation3 + $0x1] sm:$0x1]
      %v1030 = vmul.f32 %v923, %v1028
      %v1031 = vmul.f32 %v925, %v1029
      %v1032 = vadd.f32 %v965, %v967
      %v1033 = vadd.f32 %v1032, %v969
      %v1034 = vadd.f32 %v1033, %v971
      %v1035 = vadd.f32 %v1034, %v973
      %v1036 = vadd.f32 %v1035, %v975
      %v1037 = vadd.f32 %v1036, %v977
      %v1038 = vadd.f32 %v1037, %v979
      %v1039 = vadd.f32 %v1038, %v981
      %v1040 = vadd.f32 %v1039, %v983
      %v1041 = vadd.f32 %v1040, %v985
      %v1042 = vadd.f32 %v1041, %v987
      %v1043 = vadd.f32 %v1042, %v989
      %v1044 = vadd.f32 %v1043, %v991
      %v1045 = vadd.f32 %v1044, %v993
      %v1046 = vadd.f32 %v1045, %v995
      %v1047 = vrot.slane %v1046, 4
      %v1048 = vadd.f32 %v1046, %v1047
      %v1049 = vrot.slane %v1048, 2
      %v1050 = vadd.f32 %v1048, %v1049
      %v1051 = vrot.slane %v1050, 1
      %v1052 = vadd.f32 %v1050, %v1051
      %v1053 = vadd.f32 %v997, %v999
      %v1054 = vadd.f32 %v1053, %v1001
      %v1055 = vadd.f32 %v1054, %v1003
      %v1056 = vadd.f32 %v1055, %v1005
      %v1057 = vadd.f32 %v1056, %v1007
      %v1058 = vadd.f32 %v1057, %v1009
      %v1059 = vadd.f32 %v1058, %v1011
      %v1060 = vadd.f32 %v1059, %v1013
      %v1061 = vadd.f32 %v1060, %v1015
      %v1062 = vadd.f32 %v1061, %v1017
      %v1063 = vadd.f32 %v1062, %v1019
      %v1064 = vadd.f32 %v1063, %v1021
      %v1065 = vadd.f32 %v1064, %v1023
      %v1066 = vadd.f32 %v1065, %v1025
      %v1067 = vadd.f32 %v1066, %v1027
      %v1068 = vrot.slane %v1067, 4
      %v1069 = vadd.f32 %v1067, %v1068
      %v1070 = vrot.slane %v1069, 2
      %v1071 = vadd.f32 %v1069, %v1070
      %v1072 = vrot.slane %v1071, 1
      %v1073 = vadd.f32 %v1071, %v1072
      %v1074 = vadd.f32 %v1030, %v1052
      %v1075 = vadd.f32 %v1031, %v1073
      %1076 = vst [vmem:[#allocation3] sm:$0x1] %v1074
      %1077 = vst [vmem:[#allocation3 + $0x1] sm:$0x1] %v1075
      %v1078 = vld [vmem:[#allocation4] sm:$0xff]
      %v1079 = vld [vmem:[#allocation4 + $0x8] sm:$0xff]
      %v1080 = vld [vmem:[#allocation4 + $0x10] sm:$0xff]
      %v1081 = vld [vmem:[#allocation4 + $0x18] sm:$0xff]
      %v1084 = vperm.slane %v923, 0
      %v1085 = vperm.slane %v925, 0
      %v1088 = vmul.f32 %v1084, %v1078
      %v1089 = vmul.f32 %v1084, %v1079
      %v1090 = vmul.f32 %v1085, %v1080
      %v1091 = vmul.f32 %v1085, %v1081
      %v1092 = vld [vmem:[%s351] sm:$0xff]
      %v1093 = vld [vmem:[%s351 + $0x8] sm:$0xff]
      %v1094 = vld [vmem:[%s351 + $0x10] sm:$0xff]
      %v1095 = vld [vmem:[%s351 + $0x18] sm:$0xff]
      %1096 = vmatpush.msra.mxu0 %v995
      %1097 = vmatpush.msra.mxu0 %v993
      %1098 = vmatpush.msra.mxu0 %v991
      %1099 = vmatpush.msra.mxu0 %v989
      %1100 = vmatpush.msra.mxu0 %v987
      %1101 = vmatpush.msra.mxu0 %v985
      %1102 = vmatpush.msra.mxu0 %v983
      %1103 = vmatpush.msra.mxu0 %v981
      %1104 = vmatpush.msra.mxu0 %v979
      %1105 = vmatpush.msra.mxu0 %v977
      %1106 = vmatpush.msra.mxu0 %v975
      %1107 = vmatpush.msra.mxu0 %v973
      %1108 = vmatpush.msra.mxu0 %v971
      %1109 = vmatpush.msra.mxu0 %v969
      %1110 = vmatpush.msra.mxu0 %v967
      %1111 = vmatpush.msra.mxu0 %v965
      %1112 = vmatmul.f32.gmra.mxu0 %v1092
      %v1113 = vpop.f32.mrf.mxu0
      %v1114 = vadd.f32 0.0, %v1113
      %1115 = vmatmul.f32.gmra.mxu0 %v1093
      %v1116 = vpop.f32.mrf.mxu0
      %v1117 = vadd.f32 0.0, %v1116
      %1118 = vdwg.mxu0
      %1119 = vmatpush.msra.mxu0 %v1027
      %1120 = vmatpush.msra.mxu0 %v1025
      %1121 = vmatpush.msra.mxu0 %v1023
      %1122 = vmatpush.msra.mxu0 %v1021
      %1123 = vmatpush.msra.mxu0 %v1019
      %1124 = vmatpush.msra.mxu0 %v1017
      %1125 = vmatpush.msra.mxu0 %v1015
      %1126 = vmatpush.msra.mxu0 %v1013
      %1127 = vmatpush.msra.mxu0 %v1011
      %1128 = vmatpush.msra.mxu0 %v1009
      %1129 = vmatpush.msra.mxu0 %v1007
      %1130 = vmatpush.msra.mxu0 %v1005
      %1131 = vmatpush.msra.mxu0 %v1003
      %1132 = vmatpush.msra.mxu0 %v1001
      %1133 = vmatpush.msra.mxu0 %v999
      %1134 = vmatpush.msra.mxu0 %v997
      %1135 = vmatmul.f32.gmra.mxu0 %v1094
      %v1136 = vpop.f32.mrf.mxu0
      %v1137 = vadd.f32 0.0, %v1136
      %1138 = vmatmul.f32.gmra.mxu0 %v1095
      %v1139 = vpop.f32.mrf.mxu0
      %v1140 = vadd.f32 0.0, %v1139
      %1141 = vdwg.mxu0
      %v1142 = vadd.f32 %v1088, %v1114
      %v1143 = vadd.f32 %v1089, %v1117
      %v1144 = vadd.f32 %v1090, %v1137
      %v1145 = vadd.f32 %v1091, %v1140
      %1146 = vst [vmem:[#allocation4] sm:$0xff] %v1142
      %1147 = vst [vmem:[#allocation4 + $0x8] sm:$0xff] %v1143
      %1148 = vst [vmem:[#allocation4 + $0x10] sm:$0xff] %v1144
      %1149 = vst [vmem:[#allocation4 + $0x18] sm:$0xff] %v1145
      %1150 = vst [vmem:[#allocation2] sm:$0x1] %v918
      %1151 = vst [vmem:[#allocation2 + $0x1] sm:$0x1] %v919
      // Predicated region
      $region45: #{adm_cross_attention.1} parent=39 // pred_check
        %p1152 = pneg %p378
      $region46: #{adm_cross_attention.1} parent=39 // pred_check_branch
        %1154 = sbr.rel (%p1152) target = $region48
      $region47: #{adm_cross_attention.1} parent=39 // pred_region
        %v1155 = vld [vmem:[#allocation3] sm:$0x1]
        %v1156 = vld [vmem:[#allocation3 + $0x1] sm:$0x1]
        %v1157 = vrcp.pop %v1155
        %v1158 = vmul.f32 %v1155, %v1157
        %v1159 = vsub.f32 1.0, %v1158
        %v1160 = vmul.f32 %v1157, %v1159
        %v1161 = vadd.f32 %v1157, %v1160
        %vm1162 = vweird.f32 %v1155
        %vm1163 = vweird.f32 %v1157
        %vm1164 = vmor %vm1162, %vm1163
        %v1165 = vsel %vm1164, %v1157, %v1161
        %v1166 = vand.u32 2147483647, %v1155
        %vm1167 = vcmp.eq.f32.partialorder %v1166, 8.507059e+37
        %v1168 = vand.u32 %v1155, 2147483648
        %v1169 = vor.u32 1.1754944e-38, %v1168
        %v1170 = vsel %vm1167, %v1169, %v1165
        %v1171 = vrcp.pop %v1156
        %v1172 = vmul.f32 %v1156, %v1171
        %v1173 = vsub.f32 1.0, %v1172
        %v1174 = vmul.f32 %v1171, %v1173
        %v1175 = vadd.f32 %v1171, %v1174
        %vm1176 = vweird.f32 %v1156
        %vm1177 = vweird.f32 %v1171
        %vm1178 = vmor %vm1176, %vm1177
        %v1179 = vsel %vm1178, %v1171, %v1175
        %v1180 = vand.u32 2147483647, %v1156
        %vm1181 = vcmp.eq.f32.partialorder %v1180, 8.507059e+37
        %v1182 = vand.u32 %v1156, 2147483648
        %v1183 = vor.u32 1.1754944e-38, %v1182
        %v1184 = vsel %vm1181, %v1183, %v1179
        %v1185 = vld [vmem:[#allocation4] sm:$0xff]
        %v1186 = vld [vmem:[#allocation4 + $0x8] sm:$0xff]
        %v1187 = vld [vmem:[#allocation4 + $0x10] sm:$0xff]
        %v1188 = vld [vmem:[#allocation4 + $0x18] sm:$0xff]
        %v1191 = vperm.slane %v1170, 0
        %v1192 = vperm.slane %v1184, 0
        %v1195 = vmul.f32 %v1185, %v1191
        %v1196 = vmul.f32 %v1186, %v1191
        %v1197 = vmul.f32 %v1187, %v1192
        %v1198 = vmul.f32 %v1188, %v1192
        %1199 = vst [vmem:[%s369] sm:$0xff] %v1195
        %1200 = vst [vmem:[%s369 + $0x8] sm:$0xff] %v1196
        %1201 = vst [vmem:[%s369 + $0x10] sm:$0xff] %v1197
        %1202 = vst [vmem:[%s369 + $0x18] sm:$0xff] %v1198
      $region48: #{adm_cross_attention.1} parent=39 // pred_fallthru
        _
      %p1203 = scmp.lt.s32.totalorder %s21, 1
      %s1204 = scalar_select %p1203, %s21, 1
      %p1205 = scmp.lt.s32.totalorder %s22, 0
      %s1206 = scalar_select %p1205, %s22, 0
      %s1207 = smul.addr %s1204, 4
      %s1208 = sadd.s32 %s1206, %s1207
      %s1209 = smul.addr %s1208, 8
      %s1210 = scalar_lea.vmem %s5, %s1209
      // Predicated region
      $region49: #{adm_cross_attention.1} parent=39 // pred_check
        %p1211 = pneg %p191
      $region50: #{adm_cross_attention.1} parent=39 // pred_check_branch
        %1213 = sbr.rel (%p1211) target = $region52
      $region51: #{adm_cross_attention.1} parent=39 // pred_region
        _
      $region52: #{adm_cross_attention.1} parent=39 // pred_fallthru
        _
    $region40: #{adm_cross_attention.1} parent=5 // pred_fallthru
      _
    %p1214 = scmp.le.s32.totalorder 2, %s11
    // Predicated region
    $region53: #{adm_cross_attention.1} parent=5 // pred_check
      %p1215 = pneg %p1214
    $region54: #{adm_cross_attention.1} parent=5 // pred_check_branch
      %1217 = sbr.rel (%p1215) target = $region56
    $region55: #{adm_cross_attention.1} parent=5 // pred_region
      %s1218 = ssub.s32 %s11, 2
      // Predicated region
      $region57: #{adm_cross_attention.1} parent=55 // pred_check
        %p1219 = pneg %p197
      $region58: #{adm_cross_attention.1} parent=55 // pred_check_branch
        %1221 = sbr.rel (%p1219) target = $region60
      $region59: #{adm_cross_attention.1} parent=55 // pred_region
        %p1222 = scmp.lt.s32.totalorder %s24, 1
        %s1223 = scalar_select %p1222, %s24, 1
        %p1224 = scmp.lt.s32.totalorder %s25, 0
        %s1225 = scalar_select %p1224, %s25, 0
        %s1226 = smul.addr %s1223, 4
        %s1227 = sadd.s32 %s1225, %s1226
        %s1228 = smul.addr %s1227, 8
        %s1229 = scalar_lea.vmem %s5, %s1228
      $region60: #{adm_cross_attention.1} parent=55 // pred_fallthru
        _
    $region56: #{adm_cross_attention.1} parent=5 // pred_fallthru
      _
  $region6: #{adm_cross_attention.1} parent=0 // loop_footer
    %s15 = sadd.s32 1, %s11
  $region7: #{adm_cross_attention.1} parent=0 // loop_footer_branch
    %10 = sbr.rel target = $region3
  $region8: #{adm_cross_attention.1} parent=0 // loop_exit
    _

</llo_original>
